<compile_context>
chip_gen: v5e
topology: v5e:2x2
jax: 0.10.0
libtpu: 0.0.40
codegen_flags: <defaults>
</compile_context>

<pallas_src>
import math
from functools import partial

import jax
import jax.numpy as jnp
from jax import lax
from jax.experimental import pallas as pl
from jax.experimental.pallas import tpu as pltpu


# ----------------------------- in-kernel helpers -----------------------------

def _layernorm(v, w, b, eps=1e-5):
    # single pass: var = E[x^2] - mu^2
    mu = jnp.mean(v, axis=-1, keepdims=True)
    ms = jnp.mean(v * v, axis=-1, keepdims=True)
    var = ms - mu * mu
    return (v - mu) * lax.rsqrt(var + eps) * w + b


def _gelu_tanh(x):
    # PyTorch nn.GELU(approximate='tanh')
    c = math.sqrt(2.0 / math.pi)
    return 0.5 * x * (1.0 + jnp.tanh(c * (x + 0.044715 * x * x * x)))


# ----------------------------- Pallas kernel --------------------------------

def block_kernel(
    x_ref,
    ln1w_ref, ln1b_ref,
    wq_ref, wk_ref, wv_ref,
    bq_ref, bk_ref, bv_ref,
    wproj_ref, bproj_ref,
    ln2w_ref, ln2b_ref,
    wfc_ref, bfc_ref,
    wpr2_ref, bpr2_ref,
    out_ref,
    *, n_head, n_embd,
):
    # x_ref: (T, C)  -- batch dim squeezed out by the BlockSpec.
    x = x_ref[...].astype(jnp.float32)
    T = x.shape[0]
    C = n_embd
    H = n_head
    hd = C // H
    scale = 1.0 / math.sqrt(hd)
    bf16 = jnp.bfloat16

    # ---- attention branch (batched over heads, head is leading dim) --------
    h1 = _layernorm(x, ln1w_ref[...], ln1b_ref[...])                 # f32 (T, C)
    h1b = jnp.broadcast_to(h1.astype(bf16)[None], (H, T, C))         # (H, T, C)

    q = jnp.einsum('htc,hcd->htd', h1b, wq_ref[...],
                   preferred_element_type=jnp.float32)               # (H, T, hd)
    k = jnp.einsum('htc,hcd->htd', h1b, wk_ref[...],
                   preferred_element_type=jnp.float32)
    v = jnp.einsum('htc,hcd->htd', h1b, wv_ref[...],
                   preferred_element_type=jnp.float32)
    q = (q + bq_ref[...]) * scale          # fold 1/sqrt(hd) into q (cheap)
    k = k + bk_ref[...]
    v = v + bv_ref[...]

    att = jnp.einsum('hqd,hkd->hqk', q.astype(bf16), k.astype(bf16),
                     preferred_element_type=jnp.float32)             # (H, T, T)

    row = lax.broadcasted_iota(jnp.int32, (T, T), 0)
    col = lax.broadcasted_iota(jnp.int32, (T, T), 1)
    causal = col <= row
    att = jnp.where(causal[None, :, :], att, -jnp.inf)

    # flash-style: unnormalized p @ v, normalize the (H,T,hd) result (cheaper
    # than normalizing the (H,T,T) probabilities when T >> hd).
    m = jnp.max(att, axis=-1, keepdims=True)
    p = jnp.exp(att - m)                                             # (H, T, T)
    denom = jnp.sum(p, axis=-1, keepdims=True)                       # (H, T, 1)

    y = jnp.einsum('hqk,hkd->hqd', p.astype(bf16), v.astype(bf16),
                   preferred_element_type=jnp.float32)               # (H, T, hd)
    y = y * pl.reciprocal(denom, approx=True)                        # EUP slot

    # Head-merge fused with output projection: sum_h (y_h @ Wproj_h).
    proj = jnp.einsum('htd,hdc->htc', y.astype(bf16), wproj_ref[...],
                      preferred_element_type=jnp.float32)            # (H, T, C)
    attn_out = jnp.sum(proj, axis=0) + bproj_ref[...]
    x1 = x + attn_out

    # ---- MLP branch ---------------------------------------------------------
    h2 = _layernorm(x1, ln2w_ref[...], ln2b_ref[...])
    hfc = jnp.dot(h2.astype(bf16), wfc_ref[...],
                  preferred_element_type=jnp.float32) + bfc_ref[...]
    g = _gelu_tanh(hfc)
    mlp = jnp.dot(g.astype(bf16), wpr2_ref[...],
                  preferred_element_type=jnp.float32) + bpr2_ref[...]

    out_ref[...] = (x1 + mlp).astype(out_ref.dtype)


# ------------------------------ wrapper --------------------------------------

def gpt2_block(x, params, *, n_head):
    """x: (B, T, C) float32. params: GPT-2-style weight dict (see __main__)."""
    B, T, C = x.shape
    H = n_head
    hd = C // H
    f32, bf16 = jnp.float32, jnp.bfloat16

    # --- one-time weight prep: per-head slabs, matmul operands in bf16 ------
    wq, wk, wv = jnp.split(params["w_qkv"].astype(f32), 3, axis=1)    # (C, C) each
    wq_h = wq.reshape(C, H, hd).transpose(1, 0, 2).astype(bf16)       # (H, C, hd)
    wk_h = wk.reshape(C, H, hd).transpose(1, 0, 2).astype(bf16)
    wv_h = wv.reshape(C, H, hd).transpose(1, 0, 2).astype(bf16)
    bq, bk, bv = jnp.split(params["b_qkv"].astype(f32).reshape(3 * C), 3)
    bq_h = bq.reshape(H, 1, hd)
    bk_h = bk.reshape(H, 1, hd)
    bv_h = bv.reshape(H, 1, hd)
    wproj_h = params["w_proj"].astype(f32).reshape(H, hd, C).astype(bf16)
    w_fc = params["w_fc"].astype(bf16)
    w_pr2 = params["w_proj2"].astype(bf16)

    kernel = partial(block_kernel, n_head=H, n_embd=C)

    def _const(shape):
        zeros = (0,) * len(shape)
        return pl.BlockSpec(shape, lambda b: zeros)

    return pl.pallas_call(
        kernel,
        out_shape=jax.ShapeDtypeStruct((B, T, C), x.dtype),
        grid_spec=pltpu.PrefetchScalarGridSpec(
            num_scalar_prefetch=0,
            grid=(B,),
            in_specs=[
                pl.BlockSpec((None, T, C), lambda b: (b, 0, 0)),        # x
                _const((1, C)), _const((1, C)),                          # ln1 w,b
                _const((H, C, hd)), _const((H, C, hd)), _const((H, C, hd)),  # Wq,Wk,Wv
                _const((H, 1, hd)), _const((H, 1, hd)), _const((H, 1, hd)),  # bq,bk,bv
                _const((H, hd, C)), _const((1, C)),                      # attn proj W,b
                _const((1, C)), _const((1, C)),                          # ln2 w,b
                _const((C, 4 * C)), _const((1, 4 * C)),                  # c_fc W,b
                _const((4 * C, C)), _const((1, C)),                      # mlp proj W,b
            ],
            out_specs=pl.BlockSpec((None, T, C), lambda b: (b, 0, 0)),
        ),
        compiler_params=pltpu.CompilerParams(
            dimension_semantics=("parallel",),      # shards batch across TCs on v7x
            vmem_limit_bytes=64 * 1024 * 1024,
        ),
    )(
        x,
        params["ln1_w"], params["ln1_b"],
        wq_h, wk_h, wv_h,
        bq_h, bk_h, bv_h,
        wproj_h, params["b_proj"],
        params["ln2_w"], params["ln2_b"],
        w_fc, params["b_fc"],
        w_pr2, params["b_proj2"],
    )


# -------------------------- pure-JAX reference --------------------------------

def ref_block(x, params, *, n_head):
    B, T, C = x.shape
    hd = C // n_head

    def ln(v, w, b):
        mu = jnp.mean(v, axis=-1, keepdims=True)
        var = jnp.mean((v - mu) ** 2, axis=-1, keepdims=True)
        return (v - mu) / jnp.sqrt(var + 1e-5) * w[0] + b[0]

    h = ln(x, params["ln1_w"], params["ln1_b"])
    qkv = h @ params["w_qkv"] + params["b_qkv"][0]
    q, k, v = jnp.split(qkv, 3, axis=-1)
    q = q.reshape(B, T, n_head, hd).transpose(0, 2, 1, 3)
    k = k.reshape(B, T, n_head, hd).transpose(0, 2, 1, 3)
    v = v.reshape(B, T, n_head, hd).transpose(0, 2, 1, 3)
    att = (q @ jnp.swapaxes(k, -2, -1)) / math.sqrt(hd)
    mask = jnp.tril(jnp.ones((T, T), dtype=bool))
    att = jnp.where(mask, att, -jnp.inf)
    att = jax.nn.softmax(att, axis=-1)
    y = (att @ v).transpose(0, 2, 1, 3).reshape(B, T, C)
    y = y @ params["w_proj"] + params["b_proj"][0]
    x = x + y

    h2 = ln(x, params["ln2_w"], params["ln2_b"])
    hfc = h2 @ params["w_fc"] + params["b_fc"][0]
    c = math.sqrt(2.0 / math.pi)
    g = 0.5 * hfc * (1.0 + jnp.tanh(c * (hfc + 0.044715 * hfc ** 3)))
    m = g @ params["w_proj2"] + params["b_proj2"][0]
    return x + m


# --------------------------------- main ---------------------------------------

if __name__ == "__main__":
    # Small config consistent with the module (block_size >= T).
    # C=128 so the (T, C) output tile is lane-dense (unmasked vst); heads=4
    # gives hd=32 per-head slabs.
    B, T, C, n_head = 2, 8, 128, 4

    key = jax.random.PRNGKey(0)
    ks = jax.random.split(key, 8)

    def nrm(k, shp, s=0.02):
        return (s * jax.random.normal(k, shp)).astype(jnp.float32)

    params = {
        "ln1_w": jnp.ones((1, C), jnp.float32),
        "ln1_b": jnp.zeros((1, C), jnp.float32),
        "w_qkv": nrm(ks[0], (C, 3 * C)),
        "b_qkv": nrm(ks[1], (1, 3 * C)),
        "w_proj": nrm(ks[2], (C, C)),
        "b_proj": nrm(ks[3], (1, C)),
        "ln2_w": jnp.ones((1, C), jnp.float32),
        "ln2_b": jnp.zeros((1, C), jnp.float32),
        "w_fc": nrm(ks[4], (C, 4 * C)),
        "b_fc": nrm(ks[5], (1, 4 * C)),
        "w_proj2": nrm(ks[6], (4 * C, C)),
        "b_proj2": nrm(ks[7], (1, C)),
    }

    x = jax.random.normal(jax.random.PRNGKey(1), (B, T, C), dtype=jnp.float32)

    out = gpt2_block(x, params, n_head=n_head)
    out = jax.block_until_ready(out)

    ref = ref_block(x, params, n_head=n_head)
    assert out.shape == (B, T, C)
    # bf16 matmul operands (f32 accumulation) + approx reciprocal => relaxed tol.
    assert jnp.allclose(out, ref, atol=2e-2, rtol=2e-2), "mismatch vs JAX reference"

    print("KERNEL_OK")
</pallas_src>

<mosaic_0001>
module attributes {stable_mosaic.version = 11 : i64} {
  func.func @block_kernel(%arg0: i32, %arg1: memref<1x8x128xf32, #tpu.memory_space<vmem>>, %arg2: memref<1x128xf32, #tpu.memory_space<vmem>>, %arg3: memref<1x128xf32, #tpu.memory_space<vmem>>, %arg4: memref<4x128x32xbf16, #tpu.memory_space<vmem>>, %arg5: memref<4x128x32xbf16, #tpu.memory_space<vmem>>, %arg6: memref<4x128x32xbf16, #tpu.memory_space<vmem>>, %arg7: memref<4x1x32xf32, #tpu.memory_space<vmem>>, %arg8: memref<4x1x32xf32, #tpu.memory_space<vmem>>, %arg9: memref<4x1x32xf32, #tpu.memory_space<vmem>>, %arg10: memref<4x32x128xbf16, #tpu.memory_space<vmem>>, %arg11: memref<1x128xf32, #tpu.memory_space<vmem>>, %arg12: memref<1x128xf32, #tpu.memory_space<vmem>>, %arg13: memref<1x128xf32, #tpu.memory_space<vmem>>, %arg14: memref<128x512xbf16, #tpu.memory_space<vmem>>, %arg15: memref<1x512xf32, #tpu.memory_space<vmem>>, %arg16: memref<512x128xbf16, #tpu.memory_space<vmem>>, %arg17: memref<1x128xf32, #tpu.memory_space<vmem>>, %arg18: memref<1x8x128xf32, #tpu.memory_space<vmem>>) attributes {dimension_semantics = [#tpu.dimension_semantics<parallel>], iteration_bounds = array<i64: 2>, scalar_prefetch = 0 : i64, scratch_operands = 0 : i64, tpu.core_type = #tpu.core_type<tc>, window_params = [{transform_indices = @transform_0, window_bounds = array<i64: 1, 8, 128>}, {pipeline_mode = #tpu.pipeline_mode<synchronous>, transform_indices = @transform_1, window_bounds = array<i64: 1, 128>}, {pipeline_mode = #tpu.pipeline_mode<synchronous>, transform_indices = @transform_2, window_bounds = array<i64: 1, 128>}, {pipeline_mode = #tpu.pipeline_mode<synchronous>, transform_indices = @transform_3, window_bounds = array<i64: 4, 128, 32>}, {pipeline_mode = #tpu.pipeline_mode<synchronous>, transform_indices = @transform_4, window_bounds = array<i64: 4, 128, 32>}, {pipeline_mode = #tpu.pipeline_mode<synchronous>, transform_indices = @transform_5, window_bounds = array<i64: 4, 128, 32>}, {pipeline_mode = #tpu.pipeline_mode<synchronous>, transform_indices = @transform_6, window_bounds = array<i64: 4, 1, 32>}, {pipeline_mode = #tpu.pipeline_mode<synchronous>, transform_indices = @transform_7, window_bounds = array<i64: 4, 1, 32>}, {pipeline_mode = #tpu.pipeline_mode<synchronous>, transform_indices = @transform_8, window_bounds = array<i64: 4, 1, 32>}, {pipeline_mode = #tpu.pipeline_mode<synchronous>, transform_indices = @transform_9, window_bounds = array<i64: 4, 32, 128>}, {pipeline_mode = #tpu.pipeline_mode<synchronous>, transform_indices = @transform_10, window_bounds = array<i64: 1, 128>}, {pipeline_mode = #tpu.pipeline_mode<synchronous>, transform_indices = @transform_11, window_bounds = array<i64: 1, 128>}, {pipeline_mode = #tpu.pipeline_mode<synchronous>, transform_indices = @transform_12, window_bounds = array<i64: 1, 128>}, {pipeline_mode = #tpu.pipeline_mode<synchronous>, transform_indices = @transform_13, window_bounds = array<i64: 128, 512>}, {pipeline_mode = #tpu.pipeline_mode<synchronous>, transform_indices = @transform_14, window_bounds = array<i64: 1, 512>}, {pipeline_mode = #tpu.pipeline_mode<synchronous>, transform_indices = @transform_15, window_bounds = array<i64: 512, 128>}, {pipeline_mode = #tpu.pipeline_mode<synchronous>, transform_indices = @transform_16, window_bounds = array<i64: 1, 128>}, {transform_indices = @transform_17, window_bounds = array<i64: 1, 8, 128>}]} {
    %c0 = arith.constant 0 : index
    %c0_0 = arith.constant 0 : index
    %c0_1 = arith.constant 0 : index
    %0 = vector.load %arg1[%c0, %c0_0, %c0_1] : memref<1x8x128xf32, #tpu.memory_space<vmem>>, vector<1x8x128xf32>
    %1 = vector.shape_cast %0 : vector<1x8x128xf32> to vector<8x128xf32>
    %c0_2 = arith.constant 0 : index
    %c0_3 = arith.constant 0 : index
    %2 = vector.load %arg2[%c0_2, %c0_3] : memref<1x128xf32, #tpu.memory_space<vmem>>, vector<1x128xf32>
    %c0_4 = arith.constant 0 : index
    %c0_5 = arith.constant 0 : index
    %3 = vector.load %arg3[%c0_4, %c0_5] : memref<1x128xf32, #tpu.memory_space<vmem>>, vector<1x128xf32>
    %cst = arith.constant dense<0.000000e+00> : vector<8xf32>
    %4 = vector.multi_reduction <add>, %1, %cst [1] : vector<8x128xf32> to vector<8xf32>
    %5 = vector.shape_cast %4 : vector<8xf32> to vector<8x1xf32>
    %cst_6 = arith.constant 1.280000e+02 : f32
    %6 = vector.broadcast %cst_6 : f32 to vector<8x1xf32>
    %7 = arith.divf %5, %6 : vector<8x1xf32>
    %8 = arith.mulf %1, %1 : vector<8x128xf32>
    %cst_7 = arith.constant dense<0.000000e+00> : vector<8xf32>
    %9 = vector.multi_reduction <add>, %8, %cst_7 [1] : vector<8x128xf32> to vector<8xf32>
    %10 = vector.shape_cast %9 : vector<8xf32> to vector<8x1xf32>
    %cst_8 = arith.constant 1.280000e+02 : f32
    %11 = vector.broadcast %cst_8 : f32 to vector<8x1xf32>
    %12 = arith.divf %10, %11 : vector<8x1xf32>
    %13 = arith.mulf %7, %7 : vector<8x1xf32>
    %14 = arith.subf %12, %13 : vector<8x1xf32>
    %15 = vector.broadcast %7 : vector<8x1xf32> to vector<8x128xf32>
    %16 = arith.subf %1, %15 : vector<8x128xf32>
    %cst_9 = arith.constant 9.99999974E-6 : f32
    %17 = vector.broadcast %cst_9 : f32 to vector<8x1xf32>
    %18 = arith.addf %14, %17 : vector<8x1xf32>
    %19 = math.rsqrt %18 : vector<8x1xf32>
    %20 = vector.broadcast %19 : vector<8x1xf32> to vector<8x128xf32>
    %21 = arith.mulf %16, %20 : vector<8x128xf32>
    %22 = vector.broadcast %2 : vector<1x128xf32> to vector<8x128xf32>
    %23 = arith.mulf %21, %22 : vector<8x128xf32>
    %24 = vector.broadcast %3 : vector<1x128xf32> to vector<8x128xf32>
    %25 = arith.addf %23, %24 : vector<8x128xf32>
    %26 = arith.truncf %25 : vector<8x128xf32> to vector<8x128xbf16>
    %27 = vector.shape_cast %26 : vector<8x128xbf16> to vector<1x8x128xbf16>
    %28 = vector.shape_cast %27 : vector<1x8x128xbf16> to vector<1x8x128xbf16>
    %29 = vector.broadcast %28 : vector<1x8x128xbf16> to vector<4x8x128xbf16>
    %c0_10 = arith.constant 0 : index
    %c0_11 = arith.constant 0 : index
    %c0_12 = arith.constant 0 : index
    %30 = vector.load %arg4[%c0_10, %c0_11, %c0_12] : memref<4x128x32xbf16, #tpu.memory_space<vmem>>, vector<4x128x32xbf16>
    "tpu.trace_start"() <{level = 10 : i32, message = "htc,hcd->htd"}> : () -> ()
    %cst_13 = arith.constant dense<0.000000e+00> : vector<4x8x32xf32>
    %31 = tpu.matmul %29, %30, %cst_13 {dimension_numbers = #tpu.dot_dimension_numbers<[2], [1], [1], [2], [0, 0, 0, 1, 1, 2], [0], [0]>} : vector<4x8x128xbf16>, vector<4x128x32xbf16>, vector<4x8x32xf32> -> vector<4x8x32xf32>
    "tpu.trace_stop"() : () -> ()
    %c0_14 = arith.constant 0 : index
    %c0_15 = arith.constant 0 : index
    %c0_16 = arith.constant 0 : index
    %32 = vector.load %arg5[%c0_14, %c0_15, %c0_16] : memref<4x128x32xbf16, #tpu.memory_space<vmem>>, vector<4x128x32xbf16>
    "tpu.trace_start"() <{level = 10 : i32, message = "htc,hcd->htd"}> : () -> ()
    %cst_17 = arith.constant dense<0.000000e+00> : vector<4x8x32xf32>
    %33 = tpu.matmul %29, %32, %cst_17 {dimension_numbers = #tpu.dot_dimension_numbers<[2], [1], [1], [2], [0, 0, 0, 1, 1, 2], [0], [0]>} : vector<4x8x128xbf16>, vector<4x128x32xbf16>, vector<4x8x32xf32> -> vector<4x8x32xf32>
    "tpu.trace_stop"() : () -> ()
    %c0_18 = arith.constant 0 : index
    %c0_19 = arith.constant 0 : index
    %c0_20 = arith.constant 0 : index
    %34 = vector.load %arg6[%c0_18, %c0_19, %c0_20] : memref<4x128x32xbf16, #tpu.memory_space<vmem>>, vector<4x128x32xbf16>
    "tpu.trace_start"() <{level = 10 : i32, message = "htc,hcd->htd"}> : () -> ()
    %cst_21 = arith.constant dense<0.000000e+00> : vector<4x8x32xf32>
    %35 = tpu.matmul %29, %34, %cst_21 {dimension_numbers = #tpu.dot_dimension_numbers<[2], [1], [1], [2], [0, 0, 0, 1, 1, 2], [0], [0]>} : vector<4x8x128xbf16>, vector<4x128x32xbf16>, vector<4x8x32xf32> -> vector<4x8x32xf32>
    "tpu.trace_stop"() : () -> ()
    %c0_22 = arith.constant 0 : index
    %c0_23 = arith.constant 0 : index
    %c0_24 = arith.constant 0 : index
    %36 = vector.load %arg7[%c0_22, %c0_23, %c0_24] : memref<4x1x32xf32, #tpu.memory_space<vmem>>, vector<4x1x32xf32>
    %37 = vector.broadcast %36 : vector<4x1x32xf32> to vector<4x8x32xf32>
    %38 = arith.addf %31, %37 : vector<4x8x32xf32>
    %cst_25 = arith.constant 0.176776692 : f32
    %39 = vector.broadcast %cst_25 : f32 to vector<4x8x32xf32>
    %40 = arith.mulf %38, %39 : vector<4x8x32xf32>
    %c0_26 = arith.constant 0 : index
    %c0_27 = arith.constant 0 : index
    %c0_28 = arith.constant 0 : index
    %41 = vector.load %arg8[%c0_26, %c0_27, %c0_28] : memref<4x1x32xf32, #tpu.memory_space<vmem>>, vector<4x1x32xf32>
    %42 = vector.broadcast %41 : vector<4x1x32xf32> to vector<4x8x32xf32>
    %43 = arith.addf %33, %42 : vector<4x8x32xf32>
    %c0_29 = arith.constant 0 : index
    %c0_30 = arith.constant 0 : index
    %c0_31 = arith.constant 0 : index
    %44 = vector.load %arg9[%c0_29, %c0_30, %c0_31] : memref<4x1x32xf32, #tpu.memory_space<vmem>>, vector<4x1x32xf32>
    %45 = vector.broadcast %44 : vector<4x1x32xf32> to vector<4x8x32xf32>
    %46 = arith.addf %35, %45 : vector<4x8x32xf32>
    %47 = arith.truncf %40 : vector<4x8x32xf32> to vector<4x8x32xbf16>
    %48 = arith.truncf %43 : vector<4x8x32xf32> to vector<4x8x32xbf16>
    "tpu.trace_start"() <{level = 10 : i32, message = "hqd,hkd->hqk"}> : () -> ()
    %cst_32 = arith.constant dense<0.000000e+00> : vector<4x8x8xf32>
    %49 = tpu.matmul %47, %48, %cst_32 {dimension_numbers = #tpu.dot_dimension_numbers<[2], [2], [1], [1], [0, 0, 0, 1, 1, 1], [0], [0]>} : vector<4x8x32xbf16>, vector<4x8x32xbf16>, vector<4x8x8xf32> -> vector<4x8x8xf32>
    "tpu.trace_stop"() : () -> ()
    %50 = tpu.iota {dimensions = array<i32: 0>} : vector<8x8xi32>
    %51 = tpu.iota {dimensions = array<i32: 1>} : vector<8x8xi32>
    %52 = arith.cmpi sle, %51, %50 : vector<8x8xi32>
    %53 = vector.shape_cast %52 : vector<8x8xi1> to vector<1x8x8xi1>
    %cst_33 = arith.constant 0xFF800000 : f32
    %54 = vector.shape_cast %53 : vector<1x8x8xi1> to vector<1x8x8xi1>
    %55 = vector.broadcast %54 : vector<1x8x8xi1> to vector<4x8x8xi1>
    %56 = vector.broadcast %cst_33 : f32 to vector<4x8x8xf32>
    %57 = arith.select %55, %49, %56 : vector<4x8x8xi1>, vector<4x8x8xf32>
    %cst_34 = arith.constant dense<0xFF800000> : vector<4x8xf32>
    %58 = vector.multi_reduction <maximumf>, %57, %cst_34 [2] : vector<4x8x8xf32> to vector<4x8xf32>
    %59 = vector.shape_cast %58 : vector<4x8xf32> to vector<4x8x1xf32>
    %60 = vector.broadcast %59 : vector<4x8x1xf32> to vector<4x8x8xf32>
    %61 = arith.subf %57, %60 : vector<4x8x8xf32>
    %62 = math.exp %61 : vector<4x8x8xf32>
    %cst_35 = arith.constant dense<0.000000e+00> : vector<4x8xf32>
    %63 = vector.multi_reduction <add>, %62, %cst_35 [2] : vector<4x8x8xf32> to vector<4x8xf32>
    %64 = vector.shape_cast %63 : vector<4x8xf32> to vector<4x8x1xf32>
    %65 = arith.truncf %62 : vector<4x8x8xf32> to vector<4x8x8xbf16>
    %66 = arith.truncf %46 : vector<4x8x32xf32> to vector<4x8x32xbf16>
    "tpu.trace_start"() <{level = 10 : i32, message = "hqk,hkd->hqd"}> : () -> ()
    %cst_36 = arith.constant dense<0.000000e+00> : vector<4x8x32xf32>
    %67 = tpu.matmul %65, %66, %cst_36 {dimension_numbers = #tpu.dot_dimension_numbers<[2], [1], [1], [2], [0, 0, 0, 1, 1, 2], [0], [0]>} : vector<4x8x8xbf16>, vector<4x8x32xbf16>, vector<4x8x32xf32> -> vector<4x8x32xf32>
    "tpu.trace_stop"() : () -> ()
    %68 = tpu.reciprocal %64 {approx = true} : vector<4x8x1xf32> -> vector<4x8x1xf32>
    %69 = vector.broadcast %68 : vector<4x8x1xf32> to vector<4x8x32xf32>
    %70 = arith.mulf %67, %69 : vector<4x8x32xf32>
    %71 = arith.truncf %70 : vector<4x8x32xf32> to vector<4x8x32xbf16>
    %c0_37 = arith.constant 0 : index
    %c0_38 = arith.constant 0 : index
    %c0_39 = arith.constant 0 : index
    %72 = vector.load %arg10[%c0_37, %c0_38, %c0_39] : memref<4x32x128xbf16, #tpu.memory_space<vmem>>, vector<4x32x128xbf16>
    "tpu.trace_start"() <{level = 10 : i32, message = "htd,hdc->htc"}> : () -> ()
    %cst_40 = arith.constant dense<0.000000e+00> : vector<4x8x128xf32>
    %73 = tpu.matmul %71, %72, %cst_40 {dimension_numbers = #tpu.dot_dimension_numbers<[2], [1], [1], [2], [0, 0, 0, 1, 1, 2], [0], [0]>} : vector<4x8x32xbf16>, vector<4x32x128xbf16>, vector<4x8x128xf32> -> vector<4x8x128xf32>
    "tpu.trace_stop"() : () -> ()
    %cst_41 = arith.constant dense<0.000000e+00> : vector<8x128xf32>
    %74 = vector.multi_reduction <add>, %73, %cst_41 [0] : vector<4x8x128xf32> to vector<8x128xf32>
    %c0_42 = arith.constant 0 : index
    %c0_43 = arith.constant 0 : index
    %75 = vector.load %arg11[%c0_42, %c0_43] : memref<1x128xf32, #tpu.memory_space<vmem>>, vector<1x128xf32>
    %76 = vector.broadcast %75 : vector<1x128xf32> to vector<8x128xf32>
    %77 = arith.addf %74, %76 : vector<8x128xf32>
    %78 = arith.addf %1, %77 : vector<8x128xf32>
    %c0_44 = arith.constant 0 : index
    %c0_45 = arith.constant 0 : index
    %79 = vector.load %arg12[%c0_44, %c0_45] : memref<1x128xf32, #tpu.memory_space<vmem>>, vector<1x128xf32>
    %c0_46 = arith.constant 0 : index
    %c0_47 = arith.constant 0 : index
    %80 = vector.load %arg13[%c0_46, %c0_47] : memref<1x128xf32, #tpu.memory_space<vmem>>, vector<1x128xf32>
    %cst_48 = arith.constant dense<0.000000e+00> : vector<8xf32>
    %81 = vector.multi_reduction <add>, %78, %cst_48 [1] : vector<8x128xf32> to vector<8xf32>
    %82 = vector.shape_cast %81 : vector<8xf32> to vector<8x1xf32>
    %cst_49 = arith.constant 1.280000e+02 : f32
    %83 = vector.broadcast %cst_49 : f32 to vector<8x1xf32>
    %84 = arith.divf %82, %83 : vector<8x1xf32>
    %85 = arith.mulf %78, %78 : vector<8x128xf32>
    %cst_50 = arith.constant dense<0.000000e+00> : vector<8xf32>
    %86 = vector.multi_reduction <add>, %85, %cst_50 [1] : vector<8x128xf32> to vector<8xf32>
    %87 = vector.shape_cast %86 : vector<8xf32> to vector<8x1xf32>
    %cst_51 = arith.constant 1.280000e+02 : f32
    %88 = vector.broadcast %cst_51 : f32 to vector<8x1xf32>
    %89 = arith.divf %87, %88 : vector<8x1xf32>
    %90 = arith.mulf %84, %84 : vector<8x1xf32>
    %91 = arith.subf %89, %90 : vector<8x1xf32>
    %92 = vector.broadcast %84 : vector<8x1xf32> to vector<8x128xf32>
    %93 = arith.subf %78, %92 : vector<8x128xf32>
    %cst_52 = arith.constant 9.99999974E-6 : f32
    %94 = vector.broadcast %cst_52 : f32 to vector<8x1xf32>
    %95 = arith.addf %91, %94 : vector<8x1xf32>
    %96 = math.rsqrt %95 : vector<8x1xf32>
    %97 = vector.broadcast %96 : vector<8x1xf32> to vector<8x128xf32>
    %98 = arith.mulf %93, %97 : vector<8x128xf32>
    %99 = vector.broadcast %79 : vector<1x128xf32> to vector<8x128xf32>
    %100 = arith.mulf %98, %99 : vector<8x128xf32>
    %101 = vector.broadcast %80 : vector<1x128xf32> to vector<8x128xf32>
    %102 = arith.addf %100, %101 : vector<8x128xf32>
    %103 = arith.truncf %102 : vector<8x128xf32> to vector<8x128xbf16>
    %c0_53 = arith.constant 0 : index
    %c0_54 = arith.constant 0 : index
    %104 = vector.load %arg14[%c0_53, %c0_54] : memref<128x512xbf16, #tpu.memory_space<vmem>>, vector<128x512xbf16>
    %cst_55 = arith.constant dense<0.000000e+00> : vector<8x512xf32>
    %105 = tpu.matmul %103, %104, %cst_55 {dimension_numbers = #tpu.dot_dimension_numbers<[1], [0], [0], [1], [0, 0, 1, 1], [], []>} : vector<8x128xbf16>, vector<128x512xbf16>, vector<8x512xf32> -> vector<8x512xf32>
    %c0_56 = arith.constant 0 : index
    %c0_57 = arith.constant 0 : index
    %106 = vector.load %arg15[%c0_56, %c0_57] : memref<1x512xf32, #tpu.memory_space<vmem>>, vector<1x512xf32>
    %107 = vector.broadcast %106 : vector<1x512xf32> to vector<8x512xf32>
    %108 = arith.addf %105, %107 : vector<8x512xf32>
    %cst_58 = arith.constant 5.000000e-01 : f32
    %109 = vector.broadcast %cst_58 : f32 to vector<8x512xf32>
    %110 = arith.mulf %109, %108 : vector<8x512xf32>
    %cst_59 = arith.constant 4.471500e-02 : f32
    %111 = vector.broadcast %cst_59 : f32 to vector<8x512xf32>
    %112 = arith.mulf %111, %108 : vector<8x512xf32>
    %113 = arith.mulf %112, %108 : vector<8x512xf32>
    %114 = arith.mulf %113, %108 : vector<8x512xf32>
    %115 = arith.addf %108, %114 : vector<8x512xf32>
    %cst_60 = arith.constant 0.797884583 : f32
    %116 = vector.broadcast %cst_60 : f32 to vector<8x512xf32>
    %117 = arith.mulf %116, %115 : vector<8x512xf32>
    %118 = math.tanh %117 : vector<8x512xf32>
    %cst_61 = arith.constant 1.000000e+00 : f32
    %119 = vector.broadcast %cst_61 : f32 to vector<8x512xf32>
    %120 = arith.addf %119, %118 : vector<8x512xf32>
    %121 = arith.mulf %110, %120 : vector<8x512xf32>
    %122 = arith.truncf %121 : vector<8x512xf32> to vector<8x512xbf16>
    %c0_62 = arith.constant 0 : index
    %c0_63 = arith.constant 0 : index
    %123 = vector.load %arg16[%c0_62, %c0_63] : memref<512x128xbf16, #tpu.memory_space<vmem>>, vector<512x128xbf16>
    %cst_64 = arith.constant dense<0.000000e+00> : vector<8x128xf32>
    %124 = tpu.matmul %122, %123, %cst_64 {dimension_numbers = #tpu.dot_dimension_numbers<[1], [0], [0], [1], [0, 0, 1, 1], [], []>} : vector<8x512xbf16>, vector<512x128xbf16>, vector<8x128xf32> -> vector<8x128xf32>
    %c0_65 = arith.constant 0 : index
    %c0_66 = arith.constant 0 : index
    %125 = vector.load %arg17[%c0_65, %c0_66] : memref<1x128xf32, #tpu.memory_space<vmem>>, vector<1x128xf32>
    %126 = vector.broadcast %125 : vector<1x128xf32> to vector<8x128xf32>
    %127 = arith.addf %124, %126 : vector<8x128xf32>
    %128 = arith.addf %78, %127 : vector<8x128xf32>
    %c0_67 = arith.constant 0 : index
    %c0_68 = arith.constant 0 : index
    %c0_69 = arith.constant 0 : index
    %129 = vector.load %arg18[%c0_67, %c0_68, %c0_69] : memref<1x8x128xf32, #tpu.memory_space<vmem>>, vector<1x8x128xf32>
    %130 = vector.shape_cast %129 : vector<1x8x128xf32> to vector<8x128xf32>
    %131 = vector.shape_cast %128 : vector<8x128xf32> to vector<1x8x128xf32>
    tpu.vector_store %arg18[%c0_67, %c0_68, %c0_69], %131 {strides = array<i32>} : memref<1x8x128xf32, #tpu.memory_space<vmem>>, vector<1x8x128xf32>,
    return
  }
  func.func @transform_0(%arg0: i32) -> (i32, i32, i32) {
    %c0_i32 = arith.constant 0 : i32
    %c0_i32_0 = arith.constant 0 : i32
    %c0_i32_1 = arith.constant 0 : i32
    return %arg0, %c0_i32, %c0_i32_0 : i32, i32, i32
  }
  func.func @transform_1(%arg0: i32) -> (i32, i32) {
    %c0_i32 = arith.constant 0 : i32
    %c0_i32_0 = arith.constant 0 : i32
    %c0_i32_1 = arith.constant 0 : i32
    return %c0_i32, %c0_i32_0 : i32, i32
  }
  func.func @transform_2(%arg0: i32) -> (i32, i32) {
    %c0_i32 = arith.constant 0 : i32
    %c0_i32_0 = arith.constant 0 : i32
    %c0_i32_1 = arith.constant 0 : i32
    return %c0_i32, %c0_i32_0 : i32, i32
  }
  func.func @transform_3(%arg0: i32) -> (i32, i32, i32) {
    %c0_i32 = arith.constant 0 : i32
    %c0_i32_0 = arith.constant 0 : i32
    %c0_i32_1 = arith.constant 0 : i32
    %c0_i32_2 = arith.constant 0 : i32
    return %c0_i32, %c0_i32_0, %c0_i32_1 : i32, i32, i32
  }
  func.func @transform_4(%arg0: i32) -> (i32, i32, i32) {
    %c0_i32 = arith.constant 0 : i32
    %c0_i32_0 = arith.constant 0 : i32
    %c0_i32_1 = arith.constant 0 : i32
    %c0_i32_2 = arith.constant 0 : i32
    return %c0_i32, %c0_i32_0, %c0_i32_1 : i32, i32, i32
  }
  func.func @transform_5(%arg0: i32) -> (i32, i32, i32) {
    %c0_i32 = arith.constant 0 : i32
    %c0_i32_0 = arith.constant 0 : i32
    %c0_i32_1 = arith.constant 0 : i32
    %c0_i32_2 = arith.constant 0 : i32
    return %c0_i32, %c0_i32_0, %c0_i32_1 : i32, i32, i32
  }
  func.func @transform_6(%arg0: i32) -> (i32, i32, i32) {
    %c0_i32 = arith.constant 0 : i32
    %c0_i32_0 = arith.constant 0 : i32
    %c0_i32_1 = arith.constant 0 : i32
    %c0_i32_2 = arith.constant 0 : i32
    return %c0_i32, %c0_i32_0, %c0_i32_1 : i32, i32, i32
  }
  func.func @transform_7(%arg0: i32) -> (i32, i32, i32) {
    %c0_i32 = arith.constant 0 : i32
    %c0_i32_0 = arith.constant 0 : i32
    %c0_i32_1 = arith.constant 0 : i32
    %c0_i32_2 = arith.constant 0 : i32
    return %c0_i32, %c0_i32_0, %c0_i32_1 : i32, i32, i32
  }
  func.func @transform_8(%arg0: i32) -> (i32, i32, i32) {
    %c0_i32 = arith.constant 0 : i32
    %c0_i32_0 = arith.constant 0 : i32
    %c0_i32_1 = arith.constant 0 : i32
    %c0_i32_2 = arith.constant 0 : i32
    return %c0_i32, %c0_i32_0, %c0_i32_1 : i32, i32, i32
  }
  func.func @transform_9(%arg0: i32) -> (i32, i32, i32) {
    %c0_i32 = arith.constant 0 : i32
    %c0_i32_0 = arith.constant 0 : i32
    %c0_i32_1 = arith.constant 0 : i32
    %c0_i32_2 = arith.constant 0 : i32
    return %c0_i32, %c0_i32_0, %c0_i32_1 : i32, i32, i32
  }
  func.func @transform_10(%arg0: i32) -> (i32, i32) {
    %c0_i32 = arith.constant 0 : i32
    %c0_i32_0 = arith.constant 0 : i32
    %c0_i32_1 = arith.constant 0 : i32
    return %c0_i32, %c0_i32_0 : i32, i32
  }
  func.func @transform_11(%arg0: i32) -> (i32, i32) {
    %c0_i32 = arith.constant 0 : i32
    %c0_i32_0 = arith.constant 0 : i32
    %c0_i32_1 = arith.constant 0 : i32
    return %c0_i32, %c0_i32_0 : i32, i32
  }
  func.func @transform_12(%arg0: i32) -> (i32, i32) {
    %c0_i32 = arith.constant 0 : i32
    %c0_i32_0 = arith.constant 0 : i32
    %c0_i32_1 = arith.constant 0 : i32
    return %c0_i32, %c0_i32_0 : i32, i32
  }
  func.func @transform_13(%arg0: i32) -> (i32, i32) {
    %c0_i32 = arith.constant 0 : i32
    %c0_i32_0 = arith.constant 0 : i32
    %c0_i32_1 = arith.constant 0 : i32
    return %c0_i32, %c0_i32_0 : i32, i32
  }
  func.func @transform_14(%arg0: i32) -> (i32, i32) {
    %c0_i32 = arith.constant 0 : i32
    %c0_i32_0 = arith.constant 0 : i32
    %c0_i32_1 = arith.constant 0 : i32
    return %c0_i32, %c0_i32_0 : i32, i32
  }
  func.func @transform_15(%arg0: i32) -> (i32, i32) {
    %c0_i32 = arith.constant 0 : i32
    %c0_i32_0 = arith.constant 0 : i32
    %c0_i32_1 = arith.constant 0 : i32
    return %c0_i32, %c0_i32_0 : i32, i32
  }
  func.func @transform_16(%arg0: i32) -> (i32, i32) {
    %c0_i32 = arith.constant 0 : i32
    %c0_i32_0 = arith.constant 0 : i32
    %c0_i32_1 = arith.constant 0 : i32
    return %c0_i32, %c0_i32_0 : i32, i32
  }
  func.func @transform_17(%arg0: i32) -> (i32, i32, i32) {
    %c0_i32 = arith.constant 0 : i32
    %c0_i32_0 = arith.constant 0 : i32
    %c0_i32_1 = arith.constant 0 : i32
    return %arg0, %c0_i32, %c0_i32_0 : i32, i32, i32
  }
}

</mosaic_0001>

<llo_original>
// kernel: tpu_custom_call.1
$region0: #{tpu_custom_call.1}
  #allocation0 [shape = 'u32[]', space=smem, size = 0x4, offset = 0x4, fixed_abs, tag = 'smem constant byte address 0x4 - core index']
  #allocation1 [shape = 'u32[72,128]{1,0:T(1,128)}', space=vmem, size = 0x9000, scoped, tag = 'internal scratch']
  %s0 = inlined_call_operand.vmem [shape: f32[2,8,128], index: 0, kind: input, shape index: {}]
  %s1 = inlined_call_operand.vmem [shape: f32[1,128], index: 1, kind: input, shape index: {}]
  %s2 = inlined_call_operand.vmem [shape: f32[1,128], index: 2, kind: input, shape index: {}]
  %s3 = inlined_call_operand.vmem [shape: bf16[4,128,32], index: 3, kind: input, shape index: {}]
  %s4 = inlined_call_operand.vmem [shape: bf16[4,128,32], index: 4, kind: input, shape index: {}]
  %s5 = inlined_call_operand.vmem [shape: bf16[4,128,32], index: 5, kind: input, shape index: {}]
  %s6 = inlined_call_operand.vmem [shape: f32[4,1,32], index: 6, kind: input, shape index: {}]
  %s7 = inlined_call_operand.vmem [shape: f32[4,1,32], index: 7, kind: input, shape index: {}]
  %s8 = inlined_call_operand.vmem [shape: f32[4,1,32], index: 8, kind: input, shape index: {}]
  %s9 = inlined_call_operand.vmem [shape: bf16[4,32,128], index: 9, kind: input, shape index: {}]
  %s10 = inlined_call_operand.vmem [shape: f32[1,128], index: 10, kind: input, shape index: {}]
  %s11 = inlined_call_operand.vmem [shape: f32[1,128], index: 11, kind: input, shape index: {}]
  %s12 = inlined_call_operand.vmem [shape: f32[1,128], index: 12, kind: input, shape index: {}]
  %s13 = inlined_call_operand.vmem [shape: bf16[128,512], index: 13, kind: input, shape index: {}]
  %s14 = inlined_call_operand.vmem [shape: f32[1,512], index: 14, kind: input, shape index: {}]
  %s15 = inlined_call_operand.vmem [shape: bf16[512,128], index: 15, kind: input, shape index: {}]
  %s16 = inlined_call_operand.vmem [shape: f32[1,128], index: 16, kind: input, shape index: {}]
  %s17 = inlined_call_operand.hbm [shape: f32[2,8,128], index: 17, kind: output, shape index: {}]
  %s18 = sld [smem:[#allocation0]]
  $region101: #{tpu_custom_call.1} parent=0
    _
  %s20 = ssub.s32 1, %s18
  %s21 = scalar_select 0, %s20, %s18
  $region1: #{tpu_custom_call.1} parent=0
    #allocation2 [shape = 'u8[8192]{0}', space=vmem, size = 0x2000, scoped, tag = 'output window, operand 0']
    #allocation3 [shape = 's32[2]{0}', space=sflag, size = 0x8, scoped, tag = 'scoped memory for tpu_custom_call.1']
    %22 = vsyncpa [#allocation3], 0
    %s23 = scalar_lea.sflag [#allocation3], 1
    %24 = vsyncpa %s23, 0
    loop: start=0, step=1, limit=4
    $region2: #{tpu_custom_call.1} parent=1 // loop_pre_header
      _
    $region3: #{tpu_custom_call.1} parent=1 // loop_header
      %s26 = sphi 0, %s30
      %p27 = scmp.ge.s32.totalorder %s26, 4
      %s36 = sphi 0, %s38
      %s39 = sphi 0, %s36
      %s40 = sphi 0, %s39
      %s56 = sphi 0, %s40
      %s60 = sphi 0, %s60
      %s62 = sphi 0, %s60
      %s63 = sphi 0, %s62
      %s77 = sphi 0, %s63
      %s81 = sphi 0, %s81
      %s83 = sphi 0, %s81
      %s84 = sphi 0, %s83
      %s98 = sphi 0, %s84
      %s102 = sphi 0, %s102
      %s104 = sphi 0, %s102
      %s105 = sphi 0, %s104
      %s119 = sphi 0, %s105
      %s123 = sphi 0, %s123
      %s125 = sphi 0, %s123
      %s126 = sphi 0, %s125
      %s140 = sphi 0, %s126
      %s144 = sphi 0, %s144
      %s146 = sphi 0, %s144
      %s147 = sphi 0, %s146
      %s161 = sphi 0, %s147
      %s165 = sphi 0, %s165
      %s167 = sphi 0, %s165
      %s168 = sphi 0, %s167
      %s182 = sphi 0, %s168
      %s186 = sphi 0, %s186
      %s188 = sphi 0, %s186
      %s189 = sphi 0, %s188
      %s203 = sphi 0, %s189
      %s207 = sphi 0, %s207
      %s209 = sphi 0, %s207
      %s210 = sphi 0, %s209
      %s224 = sphi 0, %s210
      %s228 = sphi 0, %s228
      %s230 = sphi 0, %s228
      %s231 = sphi 0, %s230
      %s245 = sphi 0, %s231
      %s249 = sphi 0, %s249
      %s251 = sphi 0, %s249
      %s252 = sphi 0, %s251
      %s266 = sphi 0, %s252
      %s270 = sphi 0, %s270
      %s272 = sphi 0, %s270
      %s273 = sphi 0, %s272
      %s287 = sphi 0, %s273
      %s291 = sphi 0, %s291
      %s293 = sphi 0, %s291
      %s294 = sphi 0, %s293
      %s308 = sphi 0, %s294
      %s312 = sphi 0, %s312
      %s314 = sphi 0, %s312
      %s315 = sphi 0, %s314
      %s329 = sphi 0, %s315
      %s333 = sphi 0, %s333
      %s335 = sphi 0, %s333
      %s336 = sphi 0, %s335
      %s350 = sphi 0, %s336
      %s354 = sphi 0, %s354
      %s356 = sphi 0, %s354
      %s357 = sphi 0, %s356
      %s371 = sphi 0, %s357
      %s375 = sphi 0, %s375
      %s377 = sphi 0, %s375
      %s378 = sphi 0, %s377
      %s392 = sphi 0, %s378
      %s398 = sphi 0, %s400
      %s401 = sphi 0, %s398
      %s402 = sphi 0, %s401
      %s418 = sphi 0, %s402
    $region4: #{tpu_custom_call.1} parent=1 // loop_header_branch
      %29 = sbr.rel (%p27) target = $region8
    $region5: #{tpu_custom_call.1} parent=1 // loop_body
      %s31 = ssub.s32 %s26, 1
      %s32 = ssub.s32 %s26, 2
      %s33 = sadd.s32 %s26, 1
      %s34 = ssub.s32 %s26, %s33
      %p35 = scmp.eq.s32.totalorder %s34, 0
      %s37 = sadd.s32 %s36, 1
      %s38 = scalar_select %p35, %s36, %s37
      %p41 = pneg %p35
      %p42 = scmp.eq.s32.totalorder %s26, 1
      %p43 = por %p41, %p42
      %p44 = scmp.ne.s32.totalorder %s36, %s39
      %p45 = scmp.eq.s32.totalorder %s26, 0
      %p46 = por %p44, %p45
      %p47 = scmp.ne.s32.totalorder %s36, %s39
      %p48 = scmp.eq.s32.totalorder %s31, 1
      %p49 = por %p47, %p48
      %p50 = scmp.ne.s32.totalorder %s39, %s40
      %p51 = scmp.eq.s32.totalorder %s31, 0
      %p52 = por %p50, %p51
      %p53 = scmp.ne.s32.totalorder %s39, %s40
      %p54 = scmp.eq.s32.totalorder %s32, 1
      %p55 = por %p53, %p54
      %p57 = scmp.ne.s32.totalorder %s40, %s56
      %p58 = scmp.eq.s32.totalorder %s32, 0
      %p59 = por %p57, %p58
      %s61 = sadd.s32 %s60, 1
      %p64 = scmp.eq.s32.totalorder %s26, 1
      %p65 = scmp.ne.s32.totalorder %s60, %s62
      %p66 = scmp.eq.s32.totalorder %s26, 0
      %p67 = por %p65, %p66
      %p68 = scmp.ne.s32.totalorder %s60, %s62
      %p69 = scmp.eq.s32.totalorder %s31, 1
      %p70 = por %p68, %p69
      %p71 = scmp.ne.s32.totalorder %s62, %s63
      %p72 = scmp.eq.s32.totalorder %s31, 0
      %p73 = por %p71, %p72
      %p74 = scmp.ne.s32.totalorder %s62, %s63
      %p75 = scmp.eq.s32.totalorder %s32, 1
      %p76 = por %p74, %p75
      %p78 = scmp.ne.s32.totalorder %s63, %s77
      %p79 = scmp.eq.s32.totalorder %s32, 0
      %p80 = por %p78, %p79
      %s82 = sadd.s32 %s81, 1
      %p85 = scmp.eq.s32.totalorder %s26, 1
      %p86 = scmp.ne.s32.totalorder %s81, %s83
      %p87 = scmp.eq.s32.totalorder %s26, 0
      %p88 = por %p86, %p87
      %p89 = scmp.ne.s32.totalorder %s81, %s83
      %p90 = scmp.eq.s32.totalorder %s31, 1
      %p91 = por %p89, %p90
      %p92 = scmp.ne.s32.totalorder %s83, %s84
      %p93 = scmp.eq.s32.totalorder %s31, 0
      %p94 = por %p92, %p93
      %p95 = scmp.ne.s32.totalorder %s83, %s84
      %p96 = scmp.eq.s32.totalorder %s32, 1
      %p97 = por %p95, %p96
      %p99 = scmp.ne.s32.totalorder %s84, %s98
      %p100 = scmp.eq.s32.totalorder %s32, 0
      %p101 = por %p99, %p100
      %s103 = sadd.s32 %s102, 1
      %p106 = scmp.eq.s32.totalorder %s26, 1
      %p107 = scmp.ne.s32.totalorder %s102, %s104
      %p108 = scmp.eq.s32.totalorder %s26, 0
      %p109 = por %p107, %p108
      %p110 = scmp.ne.s32.totalorder %s102, %s104
      %p111 = scmp.eq.s32.totalorder %s31, 1
      %p112 = por %p110, %p111
      %p113 = scmp.ne.s32.totalorder %s104, %s105
      %p114 = scmp.eq.s32.totalorder %s31, 0
      %p115 = por %p113, %p114
      %p116 = scmp.ne.s32.totalorder %s104, %s105
      %p117 = scmp.eq.s32.totalorder %s32, 1
      %p118 = por %p116, %p117
      %p120 = scmp.ne.s32.totalorder %s105, %s119
      %p121 = scmp.eq.s32.totalorder %s32, 0
      %p122 = por %p120, %p121
      %s124 = sadd.s32 %s123, 1
      %p127 = scmp.eq.s32.totalorder %s26, 1
      %p128 = scmp.ne.s32.totalorder %s123, %s125
      %p129 = scmp.eq.s32.totalorder %s26, 0
      %p130 = por %p128, %p129
      %p131 = scmp.ne.s32.totalorder %s123, %s125
      %p132 = scmp.eq.s32.totalorder %s31, 1
      %p133 = por %p131, %p132
      %p134 = scmp.ne.s32.totalorder %s125, %s126
      %p135 = scmp.eq.s32.totalorder %s31, 0
      %p136 = por %p134, %p135
      %p137 = scmp.ne.s32.totalorder %s125, %s126
      %p138 = scmp.eq.s32.totalorder %s32, 1
      %p139 = por %p137, %p138
      %p141 = scmp.ne.s32.totalorder %s126, %s140
      %p142 = scmp.eq.s32.totalorder %s32, 0
      %p143 = por %p141, %p142
      %s145 = sadd.s32 %s144, 1
      %p148 = scmp.eq.s32.totalorder %s26, 1
      %p149 = scmp.ne.s32.totalorder %s144, %s146
      %p150 = scmp.eq.s32.totalorder %s26, 0
      %p151 = por %p149, %p150
      %p152 = scmp.ne.s32.totalorder %s144, %s146
      %p153 = scmp.eq.s32.totalorder %s31, 1
      %p154 = por %p152, %p153
      %p155 = scmp.ne.s32.totalorder %s146, %s147
      %p156 = scmp.eq.s32.totalorder %s31, 0
      %p157 = por %p155, %p156
      %p158 = scmp.ne.s32.totalorder %s146, %s147
      %p159 = scmp.eq.s32.totalorder %s32, 1
      %p160 = por %p158, %p159
      %p162 = scmp.ne.s32.totalorder %s147, %s161
      %p163 = scmp.eq.s32.totalorder %s32, 0
      %p164 = por %p162, %p163
      %s166 = sadd.s32 %s165, 1
      %p169 = scmp.eq.s32.totalorder %s26, 1
      %p170 = scmp.ne.s32.totalorder %s165, %s167
      %p171 = scmp.eq.s32.totalorder %s26, 0
      %p172 = por %p170, %p171
      %p173 = scmp.ne.s32.totalorder %s165, %s167
      %p174 = scmp.eq.s32.totalorder %s31, 1
      %p175 = por %p173, %p174
      %p176 = scmp.ne.s32.totalorder %s167, %s168
      %p177 = scmp.eq.s32.totalorder %s31, 0
      %p178 = por %p176, %p177
      %p179 = scmp.ne.s32.totalorder %s167, %s168
      %p180 = scmp.eq.s32.totalorder %s32, 1
      %p181 = por %p179, %p180
      %p183 = scmp.ne.s32.totalorder %s168, %s182
      %p184 = scmp.eq.s32.totalorder %s32, 0
      %p185 = por %p183, %p184
      %s187 = sadd.s32 %s186, 1
      %p190 = scmp.eq.s32.totalorder %s26, 1
      %p191 = scmp.ne.s32.totalorder %s186, %s188
      %p192 = scmp.eq.s32.totalorder %s26, 0
      %p193 = por %p191, %p192
      %p194 = scmp.ne.s32.totalorder %s186, %s188
      %p195 = scmp.eq.s32.totalorder %s31, 1
      %p196 = por %p194, %p195
      %p197 = scmp.ne.s32.totalorder %s188, %s189
      %p198 = scmp.eq.s32.totalorder %s31, 0
      %p199 = por %p197, %p198
      %p200 = scmp.ne.s32.totalorder %s188, %s189
      %p201 = scmp.eq.s32.totalorder %s32, 1
      %p202 = por %p200, %p201
      %p204 = scmp.ne.s32.totalorder %s189, %s203
      %p205 = scmp.eq.s32.totalorder %s32, 0
      %p206 = por %p204, %p205
      %s208 = sadd.s32 %s207, 1
      %p211 = scmp.eq.s32.totalorder %s26, 1
      %p212 = scmp.ne.s32.totalorder %s207, %s209
      %p213 = scmp.eq.s32.totalorder %s26, 0
      %p214 = por %p212, %p213
      %p215 = scmp.ne.s32.totalorder %s207, %s209
      %p216 = scmp.eq.s32.totalorder %s31, 1
      %p217 = por %p215, %p216
      %p218 = scmp.ne.s32.totalorder %s209, %s210
      %p219 = scmp.eq.s32.totalorder %s31, 0
      %p220 = por %p218, %p219
      %p221 = scmp.ne.s32.totalorder %s209, %s210
      %p222 = scmp.eq.s32.totalorder %s32, 1
      %p223 = por %p221, %p222
      %p225 = scmp.ne.s32.totalorder %s210, %s224
      %p226 = scmp.eq.s32.totalorder %s32, 0
      %p227 = por %p225, %p226
      %s229 = sadd.s32 %s228, 1
      %p232 = scmp.eq.s32.totalorder %s26, 1
      %p233 = scmp.ne.s32.totalorder %s228, %s230
      %p234 = scmp.eq.s32.totalorder %s26, 0
      %p235 = por %p233, %p234
      %p236 = scmp.ne.s32.totalorder %s228, %s230
      %p237 = scmp.eq.s32.totalorder %s31, 1
      %p238 = por %p236, %p237
      %p239 = scmp.ne.s32.totalorder %s230, %s231
      %p240 = scmp.eq.s32.totalorder %s31, 0
      %p241 = por %p239, %p240
      %p242 = scmp.ne.s32.totalorder %s230, %s231
      %p243 = scmp.eq.s32.totalorder %s32, 1
      %p244 = por %p242, %p243
      %p246 = scmp.ne.s32.totalorder %s231, %s245
      %p247 = scmp.eq.s32.totalorder %s32, 0
      %p248 = por %p246, %p247
      %s250 = sadd.s32 %s249, 1
      %p253 = scmp.eq.s32.totalorder %s26, 1
      %p254 = scmp.ne.s32.totalorder %s249, %s251
      %p255 = scmp.eq.s32.totalorder %s26, 0
      %p256 = por %p254, %p255
      %p257 = scmp.ne.s32.totalorder %s249, %s251
      %p258 = scmp.eq.s32.totalorder %s31, 1
      %p259 = por %p257, %p258
      %p260 = scmp.ne.s32.totalorder %s251, %s252
      %p261 = scmp.eq.s32.totalorder %s31, 0
      %p262 = por %p260, %p261
      %p263 = scmp.ne.s32.totalorder %s251, %s252
      %p264 = scmp.eq.s32.totalorder %s32, 1
      %p265 = por %p263, %p264
      %p267 = scmp.ne.s32.totalorder %s252, %s266
      %p268 = scmp.eq.s32.totalorder %s32, 0
      %p269 = por %p267, %p268
      %s271 = sadd.s32 %s270, 1
      %p274 = scmp.eq.s32.totalorder %s26, 1
      %p275 = scmp.ne.s32.totalorder %s270, %s272
      %p276 = scmp.eq.s32.totalorder %s26, 0
      %p277 = por %p275, %p276
      %p278 = scmp.ne.s32.totalorder %s270, %s272
      %p279 = scmp.eq.s32.totalorder %s31, 1
      %p280 = por %p278, %p279
      %p281 = scmp.ne.s32.totalorder %s272, %s273
      %p282 = scmp.eq.s32.totalorder %s31, 0
      %p283 = por %p281, %p282
      %p284 = scmp.ne.s32.totalorder %s272, %s273
      %p285 = scmp.eq.s32.totalorder %s32, 1
      %p286 = por %p284, %p285
      %p288 = scmp.ne.s32.totalorder %s273, %s287
      %p289 = scmp.eq.s32.totalorder %s32, 0
      %p290 = por %p288, %p289
      %s292 = sadd.s32 %s291, 1
      %p295 = scmp.eq.s32.totalorder %s26, 1
      %p296 = scmp.ne.s32.totalorder %s291, %s293
      %p297 = scmp.eq.s32.totalorder %s26, 0
      %p298 = por %p296, %p297
      %p299 = scmp.ne.s32.totalorder %s291, %s293
      %p300 = scmp.eq.s32.totalorder %s31, 1
      %p301 = por %p299, %p300
      %p302 = scmp.ne.s32.totalorder %s293, %s294
      %p303 = scmp.eq.s32.totalorder %s31, 0
      %p304 = por %p302, %p303
      %p305 = scmp.ne.s32.totalorder %s293, %s294
      %p306 = scmp.eq.s32.totalorder %s32, 1
      %p307 = por %p305, %p306
      %p309 = scmp.ne.s32.totalorder %s294, %s308
      %p310 = scmp.eq.s32.totalorder %s32, 0
      %p311 = por %p309, %p310
      %s313 = sadd.s32 %s312, 1
      %p316 = scmp.eq.s32.totalorder %s26, 1
      %p317 = scmp.ne.s32.totalorder %s312, %s314
      %p318 = scmp.eq.s32.totalorder %s26, 0
      %p319 = por %p317, %p318
      %p320 = scmp.ne.s32.totalorder %s312, %s314
      %p321 = scmp.eq.s32.totalorder %s31, 1
      %p322 = por %p320, %p321
      %p323 = scmp.ne.s32.totalorder %s314, %s315
      %p324 = scmp.eq.s32.totalorder %s31, 0
      %p325 = por %p323, %p324
      %p326 = scmp.ne.s32.totalorder %s314, %s315
      %p327 = scmp.eq.s32.totalorder %s32, 1
      %p328 = por %p326, %p327
      %p330 = scmp.ne.s32.totalorder %s315, %s329
      %p331 = scmp.eq.s32.totalorder %s32, 0
      %p332 = por %p330, %p331
      %s334 = sadd.s32 %s333, 1
      %p337 = scmp.eq.s32.totalorder %s26, 1
      %p338 = scmp.ne.s32.totalorder %s333, %s335
      %p339 = scmp.eq.s32.totalorder %s26, 0
      %p340 = por %p338, %p339
      %p341 = scmp.ne.s32.totalorder %s333, %s335
      %p342 = scmp.eq.s32.totalorder %s31, 1
      %p343 = por %p341, %p342
      %p344 = scmp.ne.s32.totalorder %s335, %s336
      %p345 = scmp.eq.s32.totalorder %s31, 0
      %p346 = por %p344, %p345
      %p347 = scmp.ne.s32.totalorder %s335, %s336
      %p348 = scmp.eq.s32.totalorder %s32, 1
      %p349 = por %p347, %p348
      %p351 = scmp.ne.s32.totalorder %s336, %s350
      %p352 = scmp.eq.s32.totalorder %s32, 0
      %p353 = por %p351, %p352
      %s355 = sadd.s32 %s354, 1
      %p358 = scmp.eq.s32.totalorder %s26, 1
      %p359 = scmp.ne.s32.totalorder %s354, %s356
      %p360 = scmp.eq.s32.totalorder %s26, 0
      %p361 = por %p359, %p360
      %p362 = scmp.ne.s32.totalorder %s354, %s356
      %p363 = scmp.eq.s32.totalorder %s31, 1
      %p364 = por %p362, %p363
      %p365 = scmp.ne.s32.totalorder %s356, %s357
      %p366 = scmp.eq.s32.totalorder %s31, 0
      %p367 = por %p365, %p366
      %p368 = scmp.ne.s32.totalorder %s356, %s357
      %p369 = scmp.eq.s32.totalorder %s32, 1
      %p370 = por %p368, %p369
      %p372 = scmp.ne.s32.totalorder %s357, %s371
      %p373 = scmp.eq.s32.totalorder %s32, 0
      %p374 = por %p372, %p373
      %s376 = sadd.s32 %s375, 1
      %p379 = scmp.eq.s32.totalorder %s26, 1
      %p380 = scmp.ne.s32.totalorder %s375, %s377
      %p381 = scmp.eq.s32.totalorder %s26, 0
      %p382 = por %p380, %p381
      %p383 = scmp.ne.s32.totalorder %s375, %s377
      %p384 = scmp.eq.s32.totalorder %s31, 1
      %p385 = por %p383, %p384
      %p386 = scmp.ne.s32.totalorder %s377, %s378
      %p387 = scmp.eq.s32.totalorder %s31, 0
      %p388 = por %p386, %p387
      %p389 = scmp.ne.s32.totalorder %s377, %s378
      %p390 = scmp.eq.s32.totalorder %s32, 1
      %p391 = por %p389, %p390
      %p393 = scmp.ne.s32.totalorder %s378, %s392
      %p394 = scmp.eq.s32.totalorder %s32, 0
      %p395 = por %p393, %p394
      %s396 = ssub.s32 %s26, %s33
      %p397 = scmp.eq.s32.totalorder %s396, 0
      %s399 = sadd.s32 %s398, 1
      %s400 = scalar_select %p397, %s398, %s399
      %p403 = pneg %p397
      %p404 = scmp.eq.s32.totalorder %s26, 1
      %p405 = por %p403, %p404
      %p406 = scmp.ne.s32.totalorder %s398, %s401
      %p407 = scmp.eq.s32.totalorder %s26, 0
      %p408 = por %p406, %p407
      %p409 = scmp.ne.s32.totalorder %s398, %s401
      %p410 = scmp.eq.s32.totalorder %s31, 1
      %p411 = por %p409, %p410
      %p412 = scmp.ne.s32.totalorder %s401, %s402
      %p413 = scmp.eq.s32.totalorder %s31, 0
      %p414 = por %p412, %p413
      %p415 = scmp.ne.s32.totalorder %s401, %s402
      %p416 = scmp.eq.s32.totalorder %s32, 1
      %p417 = por %p415, %p416
      %p419 = scmp.ne.s32.totalorder %s402, %s418
      %p420 = scmp.eq.s32.totalorder %s32, 0
      %p421 = por %p419, %p420
      %p422 = scmp.le.s32.totalorder 1, %s26
      %p423 = scmp.lt.s32.totalorder %s26, 3
      %p424 = pnand %p422, %p423
      %p425 = pneg %p424
      // Predicated region
      $region9: #{tpu_custom_call.1} parent=5 // pred_check
        _
      $region10: #{tpu_custom_call.1} parent=5 // pred_check_branch
        %427 = sbr.rel (%p424) target = $region12
      $region11: #{tpu_custom_call.1} parent=5 // pred_region
        %s428 = ssub.s32 %s26, 1
        // Predicated region
        $region13: #{tpu_custom_call.1} parent=11 // pred_check
          %p429 = pneg %p73
        $region14: #{tpu_custom_call.1} parent=11 // pred_check_branch
          %431 = sbr.rel (%p429) target = $region16
        $region15: #{tpu_custom_call.1} parent=11 // pred_region
          _
        $region16: #{tpu_custom_call.1} parent=11 // pred_fallthru
          _
        // Predicated region
        $region17: #{tpu_custom_call.1} parent=11 // pred_check
          %p432 = pneg %p94
        $region18: #{tpu_custom_call.1} parent=11 // pred_check_branch
          %434 = sbr.rel (%p432) target = $region20
        $region19: #{tpu_custom_call.1} parent=11 // pred_region
          _
        $region20: #{tpu_custom_call.1} parent=11 // pred_fallthru
          _
        // Predicated region
        $region21: #{tpu_custom_call.1} parent=11 // pred_check
          %p435 = pneg %p115
        $region22: #{tpu_custom_call.1} parent=11 // pred_check_branch
          %437 = sbr.rel (%p435) target = $region24
        $region23: #{tpu_custom_call.1} parent=11 // pred_region
          _
        $region24: #{tpu_custom_call.1} parent=11 // pred_fallthru
          _
        // Predicated region
        $region25: #{tpu_custom_call.1} parent=11 // pred_check
          %p438 = pneg %p136
        $region26: #{tpu_custom_call.1} parent=11 // pred_check_branch
          %440 = sbr.rel (%p438) target = $region28
        $region27: #{tpu_custom_call.1} parent=11 // pred_region
          _
        $region28: #{tpu_custom_call.1} parent=11 // pred_fallthru
          _
        // Predicated region
        $region29: #{tpu_custom_call.1} parent=11 // pred_check
          %p441 = pneg %p157
        $region30: #{tpu_custom_call.1} parent=11 // pred_check_branch
          %443 = sbr.rel (%p441) target = $region32
        $region31: #{tpu_custom_call.1} parent=11 // pred_region
          _
        $region32: #{tpu_custom_call.1} parent=11 // pred_fallthru
          _
        // Predicated region
        $region33: #{tpu_custom_call.1} parent=11 // pred_check
          %p444 = pneg %p178
        $region34: #{tpu_custom_call.1} parent=11 // pred_check_branch
          %446 = sbr.rel (%p444) target = $region36
        $region35: #{tpu_custom_call.1} parent=11 // pred_region
          _
        $region36: #{tpu_custom_call.1} parent=11 // pred_fallthru
          _
        // Predicated region
        $region37: #{tpu_custom_call.1} parent=11 // pred_check
          %p447 = pneg %p199
        $region38: #{tpu_custom_call.1} parent=11 // pred_check_branch
          %449 = sbr.rel (%p447) target = $region40
        $region39: #{tpu_custom_call.1} parent=11 // pred_region
          _
        $region40: #{tpu_custom_call.1} parent=11 // pred_fallthru
          _
        // Predicated region
        $region41: #{tpu_custom_call.1} parent=11 // pred_check
          %p450 = pneg %p220
        $region42: #{tpu_custom_call.1} parent=11 // pred_check_branch
          %452 = sbr.rel (%p450) target = $region44
        $region43: #{tpu_custom_call.1} parent=11 // pred_region
          _
        $region44: #{tpu_custom_call.1} parent=11 // pred_fallthru
          _
        // Predicated region
        $region45: #{tpu_custom_call.1} parent=11 // pred_check
          %p453 = pneg %p241
        $region46: #{tpu_custom_call.1} parent=11 // pred_check_branch
          %455 = sbr.rel (%p453) target = $region48
        $region47: #{tpu_custom_call.1} parent=11 // pred_region
          _
        $region48: #{tpu_custom_call.1} parent=11 // pred_fallthru
          _
        // Predicated region
        $region49: #{tpu_custom_call.1} parent=11 // pred_check
          %p456 = pneg %p262
        $region50: #{tpu_custom_call.1} parent=11 // pred_check_branch
          %458 = sbr.rel (%p456) target = $region52
        $region51: #{tpu_custom_call.1} parent=11 // pred_region
          _
        $region52: #{tpu_custom_call.1} parent=11 // pred_fallthru
          _
        // Predicated region
        $region53: #{tpu_custom_call.1} parent=11 // pred_check
          %p459 = pneg %p283
        $region54: #{tpu_custom_call.1} parent=11 // pred_check_branch
          %461 = sbr.rel (%p459) target = $region56
        $region55: #{tpu_custom_call.1} parent=11 // pred_region
          _
        $region56: #{tpu_custom_call.1} parent=11 // pred_fallthru
          _
        // Predicated region
        $region57: #{tpu_custom_call.1} parent=11 // pred_check
          %p462 = pneg %p304
        $region58: #{tpu_custom_call.1} parent=11 // pred_check_branch
          %464 = sbr.rel (%p462) target = $region60
        $region59: #{tpu_custom_call.1} parent=11 // pred_region
          _
        $region60: #{tpu_custom_call.1} parent=11 // pred_fallthru
          _
        // Predicated region
        $region61: #{tpu_custom_call.1} parent=11 // pred_check
          %p465 = pneg %p325
        $region62: #{tpu_custom_call.1} parent=11 // pred_check_branch
          %467 = sbr.rel (%p465) target = $region64
        $region63: #{tpu_custom_call.1} parent=11 // pred_region
          _
        $region64: #{tpu_custom_call.1} parent=11 // pred_fallthru
          _
        // Predicated region
        $region65: #{tpu_custom_call.1} parent=11 // pred_check
          %p468 = pneg %p346
        $region66: #{tpu_custom_call.1} parent=11 // pred_check_branch
          %470 = sbr.rel (%p468) target = $region68
        $region67: #{tpu_custom_call.1} parent=11 // pred_region
          _
        $region68: #{tpu_custom_call.1} parent=11 // pred_fallthru
          _
        // Predicated region
        $region69: #{tpu_custom_call.1} parent=11 // pred_check
          %p471 = pneg %p367
        $region70: #{tpu_custom_call.1} parent=11 // pred_check_branch
          %473 = sbr.rel (%p471) target = $region72
        $region71: #{tpu_custom_call.1} parent=11 // pred_region
          _
        $region72: #{tpu_custom_call.1} parent=11 // pred_fallthru
          _
        // Predicated region
        $region73: #{tpu_custom_call.1} parent=11 // pred_check
          %p474 = pneg %p388
        $region74: #{tpu_custom_call.1} parent=11 // pred_check_branch
          %476 = sbr.rel (%p474) target = $region76
        $region75: #{tpu_custom_call.1} parent=11 // pred_region
          _
        $region76: #{tpu_custom_call.1} parent=11 // pred_fallthru
          _
      $region12: #{tpu_custom_call.1} parent=5 // pred_fallthru
        _
      %p477 = scmp.lt.s32.totalorder %s26, 2
      // Predicated region
      $region77: #{tpu_custom_call.1} parent=5 // pred_check
        %p478 = pneg %p477
      $region78: #{tpu_custom_call.1} parent=5 // pred_check_branch
        %480 = sbr.rel (%p478) target = $region80
      $region79: #{tpu_custom_call.1} parent=5 // pred_region
        // Predicated region
        $region81: #{tpu_custom_call.1} parent=79 // pred_check
          %p481 = pneg %p46
        $region82: #{tpu_custom_call.1} parent=79 // pred_check_branch
          %483 = sbr.rel (%p481) target = $region84
        $region83: #{tpu_custom_call.1} parent=79 // pred_region
          %p484 = scmp.lt.s32.totalorder %s26, 1
          %s485 = scalar_select %p484, %s26, 1
          %s486 = smul.addr %s485, 8
          %s487 = scalar_lea.vmem %s0, %s486
        $region84: #{tpu_custom_call.1} parent=79 // pred_fallthru
          _
      $region80: #{tpu_custom_call.1} parent=5 // pred_fallthru
        _
      %p488 = scmp.le.s32.totalorder 1, %s26
      %p489 = scmp.lt.s32.totalorder %s26, 3
      %p490 = pnand %p488, %p489
      %p491 = pneg %p490
      // Predicated region
      $region85: #{tpu_custom_call.1} parent=5 // pred_check
        _
      $region86: #{tpu_custom_call.1} parent=5 // pred_check_branch
        %493 = sbr.rel (%p490) target = $region88
      $region87: #{tpu_custom_call.1} parent=5 // pred_region
        %s494 = ssub.s32 %s26, 1
        %p495 = scmp.lt.s32.totalorder %s31, 1
        %s496 = scalar_select %p495, %s31, 1
        %s497 = smul.addr %s496, 8
        %s498 = scalar_lea.vmem %s0, %s497
        %p499 = pneg %p52
        %p500 = pneg %p49
        %p501 = pneg %p73
        %p502 = pneg %p70
        %p503 = pneg %p94
        %p504 = pneg %p91
        %p505 = pneg %p115
        %p506 = pneg %p112
        %p507 = pneg %p136
        %p508 = pneg %p133
        %p509 = pneg %p157
        %p510 = pneg %p154
        %p511 = pneg %p178
        %p512 = pneg %p175
        %p513 = pneg %p199
        %p514 = pneg %p196
        %p515 = pneg %p220
        %p516 = pneg %p217
        %p517 = pneg %p241
        %p518 = pneg %p238
        %p519 = pneg %p262
        %p520 = pneg %p259
        %p521 = pneg %p283
        %p522 = pneg %p280
        %p523 = pneg %p304
        %p524 = pneg %p301
        %p525 = pneg %p325
        %p526 = pneg %p322
        %p527 = pneg %p346
        %p528 = pneg %p343
        %p529 = pneg %p367
        %p530 = pneg %p364
        %p531 = pneg %p388
        %p532 = pneg %p385
        %p533 = pneg %p414
        %p534 = pneg %p411
        %s535 = sand.u32 %s401, 1
        %s536 = scalar_lea.sflag [#allocation3], %s535
        %s537 = sand.u32 %s401, 1
        %s538 = smul.addr %s537, 8
        %s539 = scalar_lea.vmem [#allocation2], %s538
        %p540 = scmp.lt.s32.totalorder %s31, 1
        %s541 = scalar_select %p540, %s31, 1
        %s542 = smul.addr %s541, 8
        %s543 = scalar_lea.vmem %s0, %s542
        %v545 = vld [vmem:[%s543] sm:$0xff]
        %v546 = vld [vmem:[%s1] sm:$0x1]
        %v547 = vld [vmem:[%s2] sm:$0x1]
        %548 = vadd.xlane.f32.xlu0 %v545
        %v549 = vpop.xlane.xlu0 %548
        %v550 = vrcp.pop 128.0
        %v551 = vmul.f32 128.0, %v550
        %v552 = vsub.f32 1.0, %v551
        %v553 = vmul.f32 %v550, %v552
        %v554 = vadd.f32 %v550, %v553
        %vm555 = vweird.f32 %v550
        %v556 = vsel %vm555, %v550, %v554
        %v557 = vmul.f32 %v549, %v556
        %v558 = vmul.f32 %v545, %v545
        %559 = vadd.xlane.f32.xlu0 %v558
        %v560 = vpop.xlane.xlu0 %559
        %v561 = vmul.f32 %v560, %v556
        %v562 = vmul.f32 %v557, %v557
        %v563 = vsub.f32 %v561, %v562
        %v564 = vsub.f32 %v545, %v557
        %v565 = vadd.f32 %v563, 1e-05
        %v566 = vrsqrt.pop %v565
        %v567 = vmul.f32 %v566, %v565
        %v568 = vmul.f32 %v567, %v566
        %v569 = vmul.f32 0.5, %v568
        %v570 = vsub.f32 1.5, %v569
        %v571 = vmul.f32 %v566, %v570
        %vm572 = vweird.f32 %v565
        %vm573 = vweird.f32 %v566
        %vm574 = vmor %vm572, %vm573
        %v575 = vsel %vm574, %v566, %v571
        %v576 = vmul.f32 %v564, %v575
        %v578 = vperm.slane %v546, 0
        %v580 = vmul.f32 %v576, %v578
        %v582 = vperm.slane %v547, 0
        %v584 = vadd.f32 %v580, %v582
        %v585 = vpack.c.bf16 %v584, %v584
        %v586 = vld [vmem:[%s3] sm:$0xf]
        %v587 = vld [vmem:[%s3 + $0x4] sm:$0xf]
        %v588 = vld [vmem:[%s3 + $0x8] sm:$0xf]
        %v589 = vld [vmem:[%s3 + $0xc] sm:$0xf]
        %v590 = vld [vmem:[%s3 + $0x10] sm:$0xf]
        %v591 = vld [vmem:[%s3 + $0x14] sm:$0xf]
        %v592 = vld [vmem:[%s3 + $0x18] sm:$0xf]
        %v593 = vld [vmem:[%s3 + $0x1c] sm:$0xf]
        %v594 = vld [vmem:[%s3 + $0x20] sm:$0xf]
        %v595 = vld [vmem:[%s3 + $0x24] sm:$0xf]
        %v596 = vld [vmem:[%s3 + $0x28] sm:$0xf]
        %v597 = vld [vmem:[%s3 + $0x2c] sm:$0xf]
        %v598 = vld [vmem:[%s3 + $0x30] sm:$0xf]
        %v599 = vld [vmem:[%s3 + $0x34] sm:$0xf]
        %v600 = vld [vmem:[%s3 + $0x38] sm:$0xf]
        %v601 = vld [vmem:[%s3 + $0x3c] sm:$0xf]
        %v602 = vld [vmem:[%s3 + $0x40] sm:$0xf]
        %v603 = vld [vmem:[%s3 + $0x44] sm:$0xf]
        %v604 = vld [vmem:[%s3 + $0x48] sm:$0xf]
        %v605 = vld [vmem:[%s3 + $0x4c] sm:$0xf]
        %v606 = vld [vmem:[%s3 + $0x50] sm:$0xf]
        %v607 = vld [vmem:[%s3 + $0x54] sm:$0xf]
        %v608 = vld [vmem:[%s3 + $0x58] sm:$0xf]
        %v609 = vld [vmem:[%s3 + $0x5c] sm:$0xf]
        %v610 = vld [vmem:[%s3 + $0x60] sm:$0xf]
        %v611 = vld [vmem:[%s3 + $0x64] sm:$0xf]
        %v612 = vld [vmem:[%s3 + $0x68] sm:$0xf]
        %v613 = vld [vmem:[%s3 + $0x6c] sm:$0xf]
        %v614 = vld [vmem:[%s3 + $0x70] sm:$0xf]
        %v615 = vld [vmem:[%s3 + $0x74] sm:$0xf]
        %v616 = vld [vmem:[%s3 + $0x78] sm:$0xf]
        %v617 = vld [vmem:[%s3 + $0x7c] sm:$0xf]
        %v618 = vld [vmem:[%s3 + $0x80] sm:$0xf]
        %v619 = vld [vmem:[%s3 + $0x84] sm:$0xf]
        %v620 = vld [vmem:[%s3 + $0x88] sm:$0xf]
        %v621 = vld [vmem:[%s3 + $0x8c] sm:$0xf]
        %v622 = vld [vmem:[%s3 + $0x90] sm:$0xf]
        %v623 = vld [vmem:[%s3 + $0x94] sm:$0xf]
        %v624 = vld [vmem:[%s3 + $0x98] sm:$0xf]
        %v625 = vld [vmem:[%s3 + $0x9c] sm:$0xf]
        %v626 = vld [vmem:[%s3 + $0xa0] sm:$0xf]
        %v627 = vld [vmem:[%s3 + $0xa4] sm:$0xf]
        %v628 = vld [vmem:[%s3 + $0xa8] sm:$0xf]
        %v629 = vld [vmem:[%s3 + $0xac] sm:$0xf]
        %v630 = vld [vmem:[%s3 + $0xb0] sm:$0xf]
        %v631 = vld [vmem:[%s3 + $0xb4] sm:$0xf]
        %v632 = vld [vmem:[%s3 + $0xb8] sm:$0xf]
        %v633 = vld [vmem:[%s3 + $0xbc] sm:$0xf]
        %v634 = vld [vmem:[%s3 + $0xc0] sm:$0xf]
        %v635 = vld [vmem:[%s3 + $0xc4] sm:$0xf]
        %v636 = vld [vmem:[%s3 + $0xc8] sm:$0xf]
        %v637 = vld [vmem:[%s3 + $0xcc] sm:$0xf]
        %v638 = vld [vmem:[%s3 + $0xd0] sm:$0xf]
        %v639 = vld [vmem:[%s3 + $0xd4] sm:$0xf]
        %v640 = vld [vmem:[%s3 + $0xd8] sm:$0xf]
        %v641 = vld [vmem:[%s3 + $0xdc] sm:$0xf]
        %v642 = vld [vmem:[%s3 + $0xe0] sm:$0xf]
        %v643 = vld [vmem:[%s3 + $0xe4] sm:$0xf]
        %v644 = vld [vmem:[%s3 + $0xe8] sm:$0xf]
        %v645 = vld [vmem:[%s3 + $0xec] sm:$0xf]
        %v646 = vld [vmem:[%s3 + $0xf0] sm:$0xf]
        %v647 = vld [vmem:[%s3 + $0xf4] sm:$0xf]
        %v648 = vld [vmem:[%s3 + $0xf8] sm:$0xf]
        %v649 = vld [vmem:[%s3 + $0xfc] sm:$0xf]
        %v650 = vld [vmem:[%s4] sm:$0xf]
        %v651 = vld [vmem:[%s4 + $0x4] sm:$0xf]
        %v652 = vld [vmem:[%s4 + $0x8] sm:$0xf]
        %v653 = vld [vmem:[%s4 + $0xc] sm:$0xf]
        %v654 = vld [vmem:[%s4 + $0x10] sm:$0xf]
        %v655 = vld [vmem:[%s4 + $0x14] sm:$0xf]
        %v656 = vld [vmem:[%s4 + $0x18] sm:$0xf]
        %v657 = vld [vmem:[%s4 + $0x1c] sm:$0xf]
        %v658 = vld [vmem:[%s4 + $0x20] sm:$0xf]
        %v659 = vld [vmem:[%s4 + $0x24] sm:$0xf]
        %v660 = vld [vmem:[%s4 + $0x28] sm:$0xf]
        %v661 = vld [vmem:[%s4 + $0x2c] sm:$0xf]
        %v662 = vld [vmem:[%s4 + $0x30] sm:$0xf]
        %v663 = vld [vmem:[%s4 + $0x34] sm:$0xf]
        %v664 = vld [vmem:[%s4 + $0x38] sm:$0xf]
        %v665 = vld [vmem:[%s4 + $0x3c] sm:$0xf]
        %v666 = vld [vmem:[%s4 + $0x40] sm:$0xf]
        %v667 = vld [vmem:[%s4 + $0x44] sm:$0xf]
        %v668 = vld [vmem:[%s4 + $0x48] sm:$0xf]
        %v669 = vld [vmem:[%s4 + $0x4c] sm:$0xf]
        %v670 = vld [vmem:[%s4 + $0x50] sm:$0xf]
        %v671 = vld [vmem:[%s4 + $0x54] sm:$0xf]
        %v672 = vld [vmem:[%s4 + $0x58] sm:$0xf]
        %v673 = vld [vmem:[%s4 + $0x5c] sm:$0xf]
        %v674 = vld [vmem:[%s4 + $0x60] sm:$0xf]
        %v675 = vld [vmem:[%s4 + $0x64] sm:$0xf]
        %v676 = vld [vmem:[%s4 + $0x68] sm:$0xf]
        %v677 = vld [vmem:[%s4 + $0x6c] sm:$0xf]
        %v678 = vld [vmem:[%s4 + $0x70] sm:$0xf]
        %v679 = vld [vmem:[%s4 + $0x74] sm:$0xf]
        %v680 = vld [vmem:[%s4 + $0x78] sm:$0xf]
        %v681 = vld [vmem:[%s4 + $0x7c] sm:$0xf]
        %v682 = vld [vmem:[%s4 + $0x80] sm:$0xf]
        %v683 = vld [vmem:[%s4 + $0x84] sm:$0xf]
        %v684 = vld [vmem:[%s4 + $0x88] sm:$0xf]
        %v685 = vld [vmem:[%s4 + $0x8c] sm:$0xf]
        %v686 = vld [vmem:[%s4 + $0x90] sm:$0xf]
        %v687 = vld [vmem:[%s4 + $0x94] sm:$0xf]
        %v688 = vld [vmem:[%s4 + $0x98] sm:$0xf]
        %v689 = vld [vmem:[%s4 + $0x9c] sm:$0xf]
        %v690 = vld [vmem:[%s4 + $0xa0] sm:$0xf]
        %v691 = vld [vmem:[%s4 + $0xa4] sm:$0xf]
        %v692 = vld [vmem:[%s4 + $0xa8] sm:$0xf]
        %v693 = vld [vmem:[%s4 + $0xac] sm:$0xf]
        %v694 = vld [vmem:[%s4 + $0xb0] sm:$0xf]
        %v695 = vld [vmem:[%s4 + $0xb4] sm:$0xf]
        %v696 = vld [vmem:[%s4 + $0xb8] sm:$0xf]
        %v697 = vld [vmem:[%s4 + $0xbc] sm:$0xf]
        %v698 = vld [vmem:[%s4 + $0xc0] sm:$0xf]
        %v699 = vld [vmem:[%s4 + $0xc4] sm:$0xf]
        %v700 = vld [vmem:[%s4 + $0xc8] sm:$0xf]
        %v701 = vld [vmem:[%s4 + $0xcc] sm:$0xf]
        %v702 = vld [vmem:[%s4 + $0xd0] sm:$0xf]
        %v703 = vld [vmem:[%s4 + $0xd4] sm:$0xf]
        %v704 = vld [vmem:[%s4 + $0xd8] sm:$0xf]
        %v705 = vld [vmem:[%s4 + $0xdc] sm:$0xf]
        %v706 = vld [vmem:[%s4 + $0xe0] sm:$0xf]
        %v707 = vld [vmem:[%s4 + $0xe4] sm:$0xf]
        %v708 = vld [vmem:[%s4 + $0xe8] sm:$0xf]
        %v709 = vld [vmem:[%s4 + $0xec] sm:$0xf]
        %v710 = vld [vmem:[%s4 + $0xf0] sm:$0xf]
        %v711 = vld [vmem:[%s4 + $0xf4] sm:$0xf]
        %v712 = vld [vmem:[%s4 + $0xf8] sm:$0xf]
        %v713 = vld [vmem:[%s4 + $0xfc] sm:$0xf]
        %v714 = vld [vmem:[%s5] sm:$0xf]
        %v715 = vld [vmem:[%s5 + $0x4] sm:$0xf]
        %v716 = vld [vmem:[%s5 + $0x8] sm:$0xf]
        %v717 = vld [vmem:[%s5 + $0xc] sm:$0xf]
        %v718 = vld [vmem:[%s5 + $0x10] sm:$0xf]
        %v719 = vld [vmem:[%s5 + $0x14] sm:$0xf]
        %v720 = vld [vmem:[%s5 + $0x18] sm:$0xf]
        %v721 = vld [vmem:[%s5 + $0x1c] sm:$0xf]
        %v722 = vld [vmem:[%s5 + $0x20] sm:$0xf]
        %v723 = vld [vmem:[%s5 + $0x24] sm:$0xf]
        %v724 = vld [vmem:[%s5 + $0x28] sm:$0xf]
        %v725 = vld [vmem:[%s5 + $0x2c] sm:$0xf]
        %v726 = vld [vmem:[%s5 + $0x30] sm:$0xf]
        %v727 = vld [vmem:[%s5 + $0x34] sm:$0xf]
        %v728 = vld [vmem:[%s5 + $0x38] sm:$0xf]
        %v729 = vld [vmem:[%s5 + $0x3c] sm:$0xf]
        %v730 = vld [vmem:[%s5 + $0x40] sm:$0xf]
        %v731 = vld [vmem:[%s5 + $0x44] sm:$0xf]
        %v732 = vld [vmem:[%s5 + $0x48] sm:$0xf]
        %v733 = vld [vmem:[%s5 + $0x4c] sm:$0xf]
        %v734 = vld [vmem:[%s5 + $0x50] sm:$0xf]
        %v735 = vld [vmem:[%s5 + $0x54] sm:$0xf]
        %v736 = vld [vmem:[%s5 + $0x58] sm:$0xf]
        %v737 = vld [vmem:[%s5 + $0x5c] sm:$0xf]
        %v738 = vld [vmem:[%s5 + $0x60] sm:$0xf]
        %v739 = vld [vmem:[%s5 + $0x64] sm:$0xf]
        %v740 = vld [vmem:[%s5 + $0x68] sm:$0xf]
        %v741 = vld [vmem:[%s5 + $0x6c] sm:$0xf]
        %v742 = vld [vmem:[%s5 + $0x70] sm:$0xf]
        %v743 = vld [vmem:[%s5 + $0x74] sm:$0xf]
        %v744 = vld [vmem:[%s5 + $0x78] sm:$0xf]
        %v745 = vld [vmem:[%s5 + $0x7c] sm:$0xf]
        %v746 = vld [vmem:[%s5 + $0x80] sm:$0xf]
        %v747 = vld [vmem:[%s5 + $0x84] sm:$0xf]
        %v748 = vld [vmem:[%s5 + $0x88] sm:$0xf]
        %v749 = vld [vmem:[%s5 + $0x8c] sm:$0xf]
        %v750 = vld [vmem:[%s5 + $0x90] sm:$0xf]
        %v751 = vld [vmem:[%s5 + $0x94] sm:$0xf]
        %v752 = vld [vmem:[%s5 + $0x98] sm:$0xf]
        %v753 = vld [vmem:[%s5 + $0x9c] sm:$0xf]
        %v754 = vld [vmem:[%s5 + $0xa0] sm:$0xf]
        %v755 = vld [vmem:[%s5 + $0xa4] sm:$0xf]
        %v756 = vld [vmem:[%s5 + $0xa8] sm:$0xf]
        %v757 = vld [vmem:[%s5 + $0xac] sm:$0xf]
        %v758 = vld [vmem:[%s5 + $0xb0] sm:$0xf]
        %v759 = vld [vmem:[%s5 + $0xb4] sm:$0xf]
        %v760 = vld [vmem:[%s5 + $0xb8] sm:$0xf]
        %v761 = vld [vmem:[%s5 + $0xbc] sm:$0xf]
        %v762 = vld [vmem:[%s5 + $0xc0] sm:$0xf]
        %v763 = vld [vmem:[%s5 + $0xc4] sm:$0xf]
        %v764 = vld [vmem:[%s5 + $0xc8] sm:$0xf]
        %v765 = vld [vmem:[%s5 + $0xcc] sm:$0xf]
        %v766 = vld [vmem:[%s5 + $0xd0] sm:$0xf]
        %v767 = vld [vmem:[%s5 + $0xd4] sm:$0xf]
        %v768 = vld [vmem:[%s5 + $0xd8] sm:$0xf]
        %v769 = vld [vmem:[%s5 + $0xdc] sm:$0xf]
        %v770 = vld [vmem:[%s5 + $0xe0] sm:$0xf]
        %v771 = vld [vmem:[%s5 + $0xe4] sm:$0xf]
        %v772 = vld [vmem:[%s5 + $0xe8] sm:$0xf]
        %v773 = vld [vmem:[%s5 + $0xec] sm:$0xf]
        %v774 = vld [vmem:[%s5 + $0xf0] sm:$0xf]
        %v775 = vld [vmem:[%s5 + $0xf4] sm:$0xf]
        %v776 = vld [vmem:[%s5 + $0xf8] sm:$0xf]
        %v777 = vld [vmem:[%s5 + $0xfc] sm:$0xf]
        %v778 = vld [vmem:[%s6] sm:$0x1]
        %v779 = vld [vmem:[%s6 + $0x1] sm:$0x1]
        %v780 = vld [vmem:[%s6 + $0x2] sm:$0x1]
        %v781 = vld [vmem:[%s6 + $0x3] sm:$0x1]
        %v786 = vperm.slane %v778, 0
        %v787 = vperm.slane %v779, 0
        %v788 = vperm.slane %v780, 0
        %v789 = vperm.slane %v781, 0
        %v810 = vunpack.c.l.b16 %v586
        %v811 = vunpack.c.l.b16 %v587
        %v812 = vunpack.c.l.b16 %v588
        %v813 = vunpack.c.l.b16 %v589
        %v814 = vunpack.c.l.b16 %v590
        %v815 = vunpack.c.l.b16 %v591
        %v816 = vunpack.c.l.b16 %v592
        %v817 = vunpack.c.l.b16 %v593
        %v818 = vunpack.c.l.b16 %v594
        %v819 = vunpack.c.l.b16 %v595
        %v820 = vunpack.c.l.b16 %v596
        %v821 = vunpack.c.l.b16 %v597
        %v822 = vunpack.c.l.b16 %v598
        %v823 = vunpack.c.l.b16 %v599
        %v824 = vunpack.c.l.b16 %v600
        %v825 = vunpack.c.l.b16 %v601
        %v826 = vpack.c.b16 %v811, %v810
        %v827 = vpack.c.b16 %v813, %v812
        %v828 = vpack.c.b16 %v815, %v814
        %v829 = vpack.c.b16 %v817, %v816
        %v830 = vpack.c.b16 %v819, %v818
        %v831 = vpack.c.b16 %v821, %v820
        %v832 = vpack.c.b16 %v823, %v822
        %v833 = vpack.c.b16 %v825, %v824
        %842 = vmatpush.bf16.msra.mxu0 %v833
        %843 = vmatpush.bf16.msra.mxu0 %v832
        %844 = vmatpush.bf16.msra.mxu0 %v831
        %845 = vmatpush.bf16.msra.mxu0 %v830
        %846 = vmatpush.bf16.msra.mxu0 %v829
        %847 = vmatpush.bf16.msra.mxu0 %v828
        %848 = vmatpush.bf16.msra.mxu0 %v827
        %849 = vmatpush.bf16.msra.mxu0 %v826
        %850 = vmatmul.bf16.gmra.mxu0 %v585
        %v851 = vpop.f32.mrf.mxu0
        %v852 = vadd.f32 %v786, %v851
        %v853 = vpop.f32.mrf.mxu0
        %854 = vdwg.mxu0
        %v871 = vunpack.c.l.b16 %v602
        %v872 = vunpack.c.l.b16 %v603
        %v873 = vunpack.c.l.b16 %v604
        %v874 = vunpack.c.l.b16 %v605
        %v875 = vunpack.c.l.b16 %v606
        %v876 = vunpack.c.l.b16 %v607
        %v877 = vunpack.c.l.b16 %v608
        %v878 = vunpack.c.l.b16 %v609
        %v879 = vunpack.c.l.b16 %v610
        %v880 = vunpack.c.l.b16 %v611
        %v881 = vunpack.c.l.b16 %v612
        %v882 = vunpack.c.l.b16 %v613
        %v883 = vunpack.c.l.b16 %v614
        %v884 = vunpack.c.l.b16 %v615
        %v885 = vunpack.c.l.b16 %v616
        %v886 = vunpack.c.l.b16 %v617
        %v887 = vpack.c.b16 %v872, %v871
        %v888 = vpack.c.b16 %v874, %v873
        %v889 = vpack.c.b16 %v876, %v875
        %v890 = vpack.c.b16 %v878, %v877
        %v891 = vpack.c.b16 %v880, %v879
        %v892 = vpack.c.b16 %v882, %v881
        %v893 = vpack.c.b16 %v884, %v883
        %v894 = vpack.c.b16 %v886, %v885
        %903 = vmatpush.bf16.msra.mxu0 %v894
        %904 = vmatpush.bf16.msra.mxu0 %v893
        %905 = vmatpush.bf16.msra.mxu0 %v892
        %906 = vmatpush.bf16.msra.mxu0 %v891
        %907 = vmatpush.bf16.msra.mxu0 %v890
        %908 = vmatpush.bf16.msra.mxu0 %v889
        %909 = vmatpush.bf16.msra.mxu0 %v888
        %910 = vmatpush.bf16.msra.mxu0 %v887
        %911 = vmatmul.bf16.gmra.mxu0 %v585
        %v912 = vpop.f32.mrf.mxu0
        %v913 = vadd.f32 %v787, %v912
        %v914 = vpop.f32.mrf.mxu0
        %915 = vdwg.mxu0
        %v932 = vunpack.c.l.b16 %v618
        %v933 = vunpack.c.l.b16 %v619
        %v934 = vunpack.c.l.b16 %v620
        %v935 = vunpack.c.l.b16 %v621
        %v936 = vunpack.c.l.b16 %v622
        %v937 = vunpack.c.l.b16 %v623
        %v938 = vunpack.c.l.b16 %v624
        %v939 = vunpack.c.l.b16 %v625
        %v940 = vunpack.c.l.b16 %v626
        %v941 = vunpack.c.l.b16 %v627
        %v942 = vunpack.c.l.b16 %v628
        %v943 = vunpack.c.l.b16 %v629
        %v944 = vunpack.c.l.b16 %v630
        %v945 = vunpack.c.l.b16 %v631
        %v946 = vunpack.c.l.b16 %v632
        %v947 = vunpack.c.l.b16 %v633
        %v948 = vpack.c.b16 %v933, %v932
        %v949 = vpack.c.b16 %v935, %v934
        %v950 = vpack.c.b16 %v937, %v936
        %v951 = vpack.c.b16 %v939, %v938
        %v952 = vpack.c.b16 %v941, %v940
        %v953 = vpack.c.b16 %v943, %v942
        %v954 = vpack.c.b16 %v945, %v944
        %v955 = vpack.c.b16 %v947, %v946
        %964 = vmatpush.bf16.msra.mxu0 %v955
        %965 = vmatpush.bf16.msra.mxu0 %v954
        %966 = vmatpush.bf16.msra.mxu0 %v953
        %967 = vmatpush.bf16.msra.mxu0 %v952
        %968 = vmatpush.bf16.msra.mxu0 %v951
        %969 = vmatpush.bf16.msra.mxu0 %v950
        %970 = vmatpush.bf16.msra.mxu0 %v949
        %971 = vmatpush.bf16.msra.mxu0 %v948
        %972 = vmatmul.bf16.gmra.mxu0 %v585
        %v973 = vpop.f32.mrf.mxu0
        %v974 = vadd.f32 %v788, %v973
        %v975 = vpop.f32.mrf.mxu0
        %976 = vdwg.mxu0
        %v993 = vunpack.c.l.b16 %v634
        %v994 = vunpack.c.l.b16 %v635
        %v995 = vunpack.c.l.b16 %v636
        %v996 = vunpack.c.l.b16 %v637
        %v997 = vunpack.c.l.b16 %v638
        %v998 = vunpack.c.l.b16 %v639
        %v999 = vunpack.c.l.b16 %v640
        %v1000 = vunpack.c.l.b16 %v641
        %v1001 = vunpack.c.l.b16 %v642
        %v1002 = vunpack.c.l.b16 %v643
        %v1003 = vunpack.c.l.b16 %v644
        %v1004 = vunpack.c.l.b16 %v645
        %v1005 = vunpack.c.l.b16 %v646
        %v1006 = vunpack.c.l.b16 %v647
        %v1007 = vunpack.c.l.b16 %v648
        %v1008 = vunpack.c.l.b16 %v649
        %v1009 = vpack.c.b16 %v994, %v993
        %v1010 = vpack.c.b16 %v996, %v995
        %v1011 = vpack.c.b16 %v998, %v997
        %v1012 = vpack.c.b16 %v1000, %v999
        %v1013 = vpack.c.b16 %v1002, %v1001
        %v1014 = vpack.c.b16 %v1004, %v1003
        %v1015 = vpack.c.b16 %v1006, %v1005
        %v1016 = vpack.c.b16 %v1008, %v1007
        %1025 = vmatpush.bf16.msra.mxu0 %v1016
        %1026 = vmatpush.bf16.msra.mxu0 %v1015
        %1027 = vmatpush.bf16.msra.mxu0 %v1014
        %1028 = vmatpush.bf16.msra.mxu0 %v1013
        %1029 = vmatpush.bf16.msra.mxu0 %v1012
        %1030 = vmatpush.bf16.msra.mxu0 %v1011
        %1031 = vmatpush.bf16.msra.mxu0 %v1010
        %1032 = vmatpush.bf16.msra.mxu0 %v1009
        %1033 = vmatmul.bf16.gmra.mxu0 %v585
        %v1034 = vpop.f32.mrf.mxu0
        %v1035 = vadd.f32 %v789, %v1034
        %v1036 = vpop.f32.mrf.mxu0
        %1037 = vdwg.mxu0
        %v1038 = vmul.f32 %v852, 0.17677669
        %v1039 = vmul.f32 %v913, 0.17677669
        %v1040 = vmul.f32 %v974, 0.17677669
        %v1041 = vmul.f32 %v1035, 0.17677669
        %v1042 = vld [vmem:[%s7] sm:$0x1]
        %v1043 = vld [vmem:[%s7 + $0x1] sm:$0x1]
        %v1044 = vld [vmem:[%s7 + $0x2] sm:$0x1]
        %v1045 = vld [vmem:[%s7 + $0x3] sm:$0x1]
        %v1050 = vperm.slane %v1042, 0
        %v1051 = vperm.slane %v1043, 0
        %v1052 = vperm.slane %v1044, 0
        %v1053 = vperm.slane %v1045, 0
        %v1074 = vunpack.c.l.b16 %v650
        %v1075 = vunpack.c.l.b16 %v651
        %v1076 = vunpack.c.l.b16 %v652
        %v1077 = vunpack.c.l.b16 %v653
        %v1078 = vunpack.c.l.b16 %v654
        %v1079 = vunpack.c.l.b16 %v655
        %v1080 = vunpack.c.l.b16 %v656
        %v1081 = vunpack.c.l.b16 %v657
        %v1082 = vunpack.c.l.b16 %v658
        %v1083 = vunpack.c.l.b16 %v659
        %v1084 = vunpack.c.l.b16 %v660
        %v1085 = vunpack.c.l.b16 %v661
        %v1086 = vunpack.c.l.b16 %v662
        %v1087 = vunpack.c.l.b16 %v663
        %v1088 = vunpack.c.l.b16 %v664
        %v1089 = vunpack.c.l.b16 %v665
        %v1090 = vpack.c.b16 %v1075, %v1074
        %v1091 = vpack.c.b16 %v1077, %v1076
        %v1092 = vpack.c.b16 %v1079, %v1078
        %v1093 = vpack.c.b16 %v1081, %v1080
        %v1094 = vpack.c.b16 %v1083, %v1082
        %v1095 = vpack.c.b16 %v1085, %v1084
        %v1096 = vpack.c.b16 %v1087, %v1086
        %v1097 = vpack.c.b16 %v1089, %v1088
        %1106 = vmatpush.bf16.msra.mxu0 %v1097
        %1107 = vmatpush.bf16.msra.mxu0 %v1096
        %1108 = vmatpush.bf16.msra.mxu0 %v1095
        %1109 = vmatpush.bf16.msra.mxu0 %v1094
        %1110 = vmatpush.bf16.msra.mxu0 %v1093
        %1111 = vmatpush.bf16.msra.mxu0 %v1092
        %1112 = vmatpush.bf16.msra.mxu0 %v1091
        %1113 = vmatpush.bf16.msra.mxu0 %v1090
        %1114 = vmatmul.bf16.gmra.mxu0 %v585
        %v1115 = vpop.f32.mrf.mxu0
        %v1116 = vadd.f32 %v1050, %v1115
        %v1117 = vpop.f32.mrf.mxu0
        %1118 = vdwg.mxu0
        %v1135 = vunpack.c.l.b16 %v666
        %v1136 = vunpack.c.l.b16 %v667
        %v1137 = vunpack.c.l.b16 %v668
        %v1138 = vunpack.c.l.b16 %v669
        %v1139 = vunpack.c.l.b16 %v670
        %v1140 = vunpack.c.l.b16 %v671
        %v1141 = vunpack.c.l.b16 %v672
        %v1142 = vunpack.c.l.b16 %v673
        %v1143 = vunpack.c.l.b16 %v674
        %v1144 = vunpack.c.l.b16 %v675
        %v1145 = vunpack.c.l.b16 %v676
        %v1146 = vunpack.c.l.b16 %v677
        %v1147 = vunpack.c.l.b16 %v678
        %v1148 = vunpack.c.l.b16 %v679
        %v1149 = vunpack.c.l.b16 %v680
        %v1150 = vunpack.c.l.b16 %v681
        %v1151 = vpack.c.b16 %v1136, %v1135
        %v1152 = vpack.c.b16 %v1138, %v1137
        %v1153 = vpack.c.b16 %v1140, %v1139
        %v1154 = vpack.c.b16 %v1142, %v1141
        %v1155 = vpack.c.b16 %v1144, %v1143
        %v1156 = vpack.c.b16 %v1146, %v1145
        %v1157 = vpack.c.b16 %v1148, %v1147
        %v1158 = vpack.c.b16 %v1150, %v1149
        %1167 = vmatpush.bf16.msra.mxu0 %v1158
        %1168 = vmatpush.bf16.msra.mxu0 %v1157
        %1169 = vmatpush.bf16.msra.mxu0 %v1156
        %1170 = vmatpush.bf16.msra.mxu0 %v1155
        %1171 = vmatpush.bf16.msra.mxu0 %v1154
        %1172 = vmatpush.bf16.msra.mxu0 %v1153
        %1173 = vmatpush.bf16.msra.mxu0 %v1152
        %1174 = vmatpush.bf16.msra.mxu0 %v1151
        %1175 = vmatmul.bf16.gmra.mxu0 %v585
        %v1176 = vpop.f32.mrf.mxu0
        %v1177 = vadd.f32 %v1051, %v1176
        %v1178 = vpop.f32.mrf.mxu0
        %1179 = vdwg.mxu0
        %v1196 = vunpack.c.l.b16 %v682
        %v1197 = vunpack.c.l.b16 %v683
        %v1198 = vunpack.c.l.b16 %v684
        %v1199 = vunpack.c.l.b16 %v685
        %v1200 = vunpack.c.l.b16 %v686
        %v1201 = vunpack.c.l.b16 %v687
        %v1202 = vunpack.c.l.b16 %v688
        %v1203 = vunpack.c.l.b16 %v689
        %v1204 = vunpack.c.l.b16 %v690
        %v1205 = vunpack.c.l.b16 %v691
        %v1206 = vunpack.c.l.b16 %v692
        %v1207 = vunpack.c.l.b16 %v693
        %v1208 = vunpack.c.l.b16 %v694
        %v1209 = vunpack.c.l.b16 %v695
        %v1210 = vunpack.c.l.b16 %v696
        %v1211 = vunpack.c.l.b16 %v697
        %v1212 = vpack.c.b16 %v1197, %v1196
        %v1213 = vpack.c.b16 %v1199, %v1198
        %v1214 = vpack.c.b16 %v1201, %v1200
        %v1215 = vpack.c.b16 %v1203, %v1202
        %v1216 = vpack.c.b16 %v1205, %v1204
        %v1217 = vpack.c.b16 %v1207, %v1206
        %v1218 = vpack.c.b16 %v1209, %v1208
        %v1219 = vpack.c.b16 %v1211, %v1210
        %1228 = vmatpush.bf16.msra.mxu0 %v1219
        %1229 = vmatpush.bf16.msra.mxu0 %v1218
        %1230 = vmatpush.bf16.msra.mxu0 %v1217
        %1231 = vmatpush.bf16.msra.mxu0 %v1216
        %1232 = vmatpush.bf16.msra.mxu0 %v1215
        %1233 = vmatpush.bf16.msra.mxu0 %v1214
        %1234 = vmatpush.bf16.msra.mxu0 %v1213
        %1235 = vmatpush.bf16.msra.mxu0 %v1212
        %1236 = vmatmul.bf16.gmra.mxu0 %v585
        %v1237 = vpop.f32.mrf.mxu0
        %v1238 = vadd.f32 %v1052, %v1237
        %v1239 = vpop.f32.mrf.mxu0
        %1240 = vdwg.mxu0
        %v1257 = vunpack.c.l.b16 %v698
        %v1258 = vunpack.c.l.b16 %v699
        %v1259 = vunpack.c.l.b16 %v700
        %v1260 = vunpack.c.l.b16 %v701
        %v1261 = vunpack.c.l.b16 %v702
        %v1262 = vunpack.c.l.b16 %v703
        %v1263 = vunpack.c.l.b16 %v704
        %v1264 = vunpack.c.l.b16 %v705
        %v1265 = vunpack.c.l.b16 %v706
        %v1266 = vunpack.c.l.b16 %v707
        %v1267 = vunpack.c.l.b16 %v708
        %v1268 = vunpack.c.l.b16 %v709
        %v1269 = vunpack.c.l.b16 %v710
        %v1270 = vunpack.c.l.b16 %v711
        %v1271 = vunpack.c.l.b16 %v712
        %v1272 = vunpack.c.l.b16 %v713
        %v1273 = vpack.c.b16 %v1258, %v1257
        %v1274 = vpack.c.b16 %v1260, %v1259
        %v1275 = vpack.c.b16 %v1262, %v1261
        %v1276 = vpack.c.b16 %v1264, %v1263
        %v1277 = vpack.c.b16 %v1266, %v1265
        %v1278 = vpack.c.b16 %v1268, %v1267
        %v1279 = vpack.c.b16 %v1270, %v1269
        %v1280 = vpack.c.b16 %v1272, %v1271
        %1289 = vmatpush.bf16.msra.mxu0 %v1280
        %1290 = vmatpush.bf16.msra.mxu0 %v1279
        %1291 = vmatpush.bf16.msra.mxu0 %v1278
        %1292 = vmatpush.bf16.msra.mxu0 %v1277
        %1293 = vmatpush.bf16.msra.mxu0 %v1276
        %1294 = vmatpush.bf16.msra.mxu0 %v1275
        %1295 = vmatpush.bf16.msra.mxu0 %v1274
        %1296 = vmatpush.bf16.msra.mxu0 %v1273
        %1297 = vmatmul.bf16.gmra.mxu0 %v585
        %v1298 = vpop.f32.mrf.mxu0
        %v1299 = vadd.f32 %v1053, %v1298
        %v1300 = vpop.f32.mrf.mxu0
        %1301 = vdwg.mxu0
        %v1302 = vld [vmem:[%s8] sm:$0x1]
        %v1303 = vld [vmem:[%s8 + $0x1] sm:$0x1]
        %v1304 = vld [vmem:[%s8 + $0x2] sm:$0x1]
        %v1305 = vld [vmem:[%s8 + $0x3] sm:$0x1]
        %v1310 = vperm.slane %v1302, 0
        %v1311 = vperm.slane %v1303, 0
        %v1312 = vperm.slane %v1304, 0
        %v1313 = vperm.slane %v1305, 0
        %v1334 = vunpack.c.l.b16 %v714
        %v1335 = vunpack.c.l.b16 %v715
        %v1336 = vunpack.c.l.b16 %v716
        %v1337 = vunpack.c.l.b16 %v717
        %v1338 = vunpack.c.l.b16 %v718
        %v1339 = vunpack.c.l.b16 %v719
        %v1340 = vunpack.c.l.b16 %v720
        %v1341 = vunpack.c.l.b16 %v721
        %v1342 = vunpack.c.l.b16 %v722
        %v1343 = vunpack.c.l.b16 %v723
        %v1344 = vunpack.c.l.b16 %v724
        %v1345 = vunpack.c.l.b16 %v725
        %v1346 = vunpack.c.l.b16 %v726
        %v1347 = vunpack.c.l.b16 %v727
        %v1348 = vunpack.c.l.b16 %v728
        %v1349 = vunpack.c.l.b16 %v729
        %v1350 = vpack.c.b16 %v1335, %v1334
        %v1351 = vpack.c.b16 %v1337, %v1336
        %v1352 = vpack.c.b16 %v1339, %v1338
        %v1353 = vpack.c.b16 %v1341, %v1340
        %v1354 = vpack.c.b16 %v1343, %v1342
        %v1355 = vpack.c.b16 %v1345, %v1344
        %v1356 = vpack.c.b16 %v1347, %v1346
        %v1357 = vpack.c.b16 %v1349, %v1348
        %1366 = vmatpush.bf16.msra.mxu0 %v1357
        %1367 = vmatpush.bf16.msra.mxu0 %v1356
        %1368 = vmatpush.bf16.msra.mxu0 %v1355
        %1369 = vmatpush.bf16.msra.mxu0 %v1354
        %1370 = vmatpush.bf16.msra.mxu0 %v1353
        %1371 = vmatpush.bf16.msra.mxu0 %v1352
        %1372 = vmatpush.bf16.msra.mxu0 %v1351
        %1373 = vmatpush.bf16.msra.mxu0 %v1350
        %1374 = vmatmul.bf16.gmra.mxu0 %v585
        %v1375 = vpop.f32.mrf.mxu0
        %v1376 = vadd.f32 %v1310, %v1375
        %v1377 = vpop.f32.mrf.mxu0
        %1378 = vdwg.mxu0
        %v1395 = vunpack.c.l.b16 %v730
        %v1396 = vunpack.c.l.b16 %v731
        %v1397 = vunpack.c.l.b16 %v732
        %v1398 = vunpack.c.l.b16 %v733
        %v1399 = vunpack.c.l.b16 %v734
        %v1400 = vunpack.c.l.b16 %v735
        %v1401 = vunpack.c.l.b16 %v736
        %v1402 = vunpack.c.l.b16 %v737
        %v1403 = vunpack.c.l.b16 %v738
        %v1404 = vunpack.c.l.b16 %v739
        %v1405 = vunpack.c.l.b16 %v740
        %v1406 = vunpack.c.l.b16 %v741
        %v1407 = vunpack.c.l.b16 %v742
        %v1408 = vunpack.c.l.b16 %v743
        %v1409 = vunpack.c.l.b16 %v744
        %v1410 = vunpack.c.l.b16 %v745
        %v1411 = vpack.c.b16 %v1396, %v1395
        %v1412 = vpack.c.b16 %v1398, %v1397
        %v1413 = vpack.c.b16 %v1400, %v1399
        %v1414 = vpack.c.b16 %v1402, %v1401
        %v1415 = vpack.c.b16 %v1404, %v1403
        %v1416 = vpack.c.b16 %v1406, %v1405
        %v1417 = vpack.c.b16 %v1408, %v1407
        %v1418 = vpack.c.b16 %v1410, %v1409
        %1427 = vmatpush.bf16.msra.mxu0 %v1418
        %1428 = vmatpush.bf16.msra.mxu0 %v1417
        %1429 = vmatpush.bf16.msra.mxu0 %v1416
        %1430 = vmatpush.bf16.msra.mxu0 %v1415
        %1431 = vmatpush.bf16.msra.mxu0 %v1414
        %1432 = vmatpush.bf16.msra.mxu0 %v1413
        %1433 = vmatpush.bf16.msra.mxu0 %v1412
        %1434 = vmatpush.bf16.msra.mxu0 %v1411
        %1435 = vmatmul.bf16.gmra.mxu0 %v585
        %v1436 = vpop.f32.mrf.mxu0
        %v1437 = vadd.f32 %v1311, %v1436
        %v1438 = vpop.f32.mrf.mxu0
        %1439 = vdwg.mxu0
        %v1456 = vunpack.c.l.b16 %v746
        %v1457 = vunpack.c.l.b16 %v747
        %v1458 = vunpack.c.l.b16 %v748
        %v1459 = vunpack.c.l.b16 %v749
        %v1460 = vunpack.c.l.b16 %v750
        %v1461 = vunpack.c.l.b16 %v751
        %v1462 = vunpack.c.l.b16 %v752
        %v1463 = vunpack.c.l.b16 %v753
        %v1464 = vunpack.c.l.b16 %v754
        %v1465 = vunpack.c.l.b16 %v755
        %v1466 = vunpack.c.l.b16 %v756
        %v1467 = vunpack.c.l.b16 %v757
        %v1468 = vunpack.c.l.b16 %v758
        %v1469 = vunpack.c.l.b16 %v759
        %v1470 = vunpack.c.l.b16 %v760
        %v1471 = vunpack.c.l.b16 %v761
        %v1472 = vpack.c.b16 %v1457, %v1456
        %v1473 = vpack.c.b16 %v1459, %v1458
        %v1474 = vpack.c.b16 %v1461, %v1460
        %v1475 = vpack.c.b16 %v1463, %v1462
        %v1476 = vpack.c.b16 %v1465, %v1464
        %v1477 = vpack.c.b16 %v1467, %v1466
        %v1478 = vpack.c.b16 %v1469, %v1468
        %v1479 = vpack.c.b16 %v1471, %v1470
        %1488 = vmatpush.bf16.msra.mxu0 %v1479
        %1489 = vmatpush.bf16.msra.mxu0 %v1478
        %1490 = vmatpush.bf16.msra.mxu0 %v1477
        %1491 = vmatpush.bf16.msra.mxu0 %v1476
        %1492 = vmatpush.bf16.msra.mxu0 %v1475
        %1493 = vmatpush.bf16.msra.mxu0 %v1474
        %1494 = vmatpush.bf16.msra.mxu0 %v1473
        %1495 = vmatpush.bf16.msra.mxu0 %v1472
        %1496 = vmatmul.bf16.gmra.mxu0 %v585
        %v1497 = vpop.f32.mrf.mxu0
        %v1498 = vadd.f32 %v1312, %v1497
        %v1499 = vpop.f32.mrf.mxu0
        %1500 = vdwg.mxu0
        %v1517 = vunpack.c.l.b16 %v762
        %v1518 = vunpack.c.l.b16 %v763
        %v1519 = vunpack.c.l.b16 %v764
        %v1520 = vunpack.c.l.b16 %v765
        %v1521 = vunpack.c.l.b16 %v766
        %v1522 = vunpack.c.l.b16 %v767
        %v1523 = vunpack.c.l.b16 %v768
        %v1524 = vunpack.c.l.b16 %v769
        %v1525 = vunpack.c.l.b16 %v770
        %v1526 = vunpack.c.l.b16 %v771
        %v1527 = vunpack.c.l.b16 %v772
        %v1528 = vunpack.c.l.b16 %v773
        %v1529 = vunpack.c.l.b16 %v774
        %v1530 = vunpack.c.l.b16 %v775
        %v1531 = vunpack.c.l.b16 %v776
        %v1532 = vunpack.c.l.b16 %v777
        %v1533 = vpack.c.b16 %v1518, %v1517
        %v1534 = vpack.c.b16 %v1520, %v1519
        %v1535 = vpack.c.b16 %v1522, %v1521
        %v1536 = vpack.c.b16 %v1524, %v1523
        %v1537 = vpack.c.b16 %v1526, %v1525
        %v1538 = vpack.c.b16 %v1528, %v1527
        %v1539 = vpack.c.b16 %v1530, %v1529
        %v1540 = vpack.c.b16 %v1532, %v1531
        %1549 = vmatpush.bf16.msra.mxu0 %v1540
        %1550 = vmatpush.bf16.msra.mxu0 %v1539
        %1551 = vmatpush.bf16.msra.mxu0 %v1538
        %1552 = vmatpush.bf16.msra.mxu0 %v1537
        %1553 = vmatpush.bf16.msra.mxu0 %v1536
        %1554 = vmatpush.bf16.msra.mxu0 %v1535
        %1555 = vmatpush.bf16.msra.mxu0 %v1534
        %1556 = vmatpush.bf16.msra.mxu0 %v1533
        %1557 = vmatmul.bf16.gmra.mxu0 %v585
        %v1558 = vpop.f32.mrf.mxu0
        %v1559 = vadd.f32 %v1313, %v1558
        %v1560 = vpop.f32.mrf.mxu0
        %1561 = vdwg.mxu0
        %v1562 = vpack.c.bf16 %v1038, %v1038
        %v1563 = vpack.c.bf16 %v1039, %v1039
        %v1564 = vpack.c.bf16 %v1040, %v1040
        %v1565 = vpack.c.bf16 %v1041, %v1041
        %v1566 = vpack.c.bf16 %v1116, %v1116
        %v1567 = vpack.c.bf16 %v1177, %v1177
        %v1568 = vpack.c.bf16 %v1238, %v1238
        %v1569 = vpack.c.bf16 %v1299, %v1299
        %vm1570 = vcmask 261120
        %v1572 = vsel %vm1570, %v1562, 0
        %v1575 = vsel %vm1570, %v1566, 0
        %1577 = vmatpush.bf16.xpose.msra.mxu0 0
        %1578 = vmatpush.bf16.xpose.msra.mxu0 0
        %1579 = vmatpush.bf16.xpose.msra.mxu0 0
        %1580 = vmatpush.bf16.xpose.msra.mxu0 0
        %1581 = vmatpush.bf16.xpose.msra.mxu0 0
        %1582 = vmatpush.bf16.xpose.msra.mxu0 0
        %1583 = vmatpush.bf16.xpose.msra.mxu0 0
        %1584 = vmatpush.bf16.xpose.msra.mxu0 %v1575
        %1585 = vmatmul.bf16.gmra.mxu0 %v1572
        %v1586 = vpop.f32.mrf.mxu0
        %v1587 = vadd.f32 0.0, %v1586
        %v1588 = vpop.f32.mrf.mxu0
        %1589 = vdwg.mxu0
        %v1591 = vsel %vm1570, %v1563, 0
        %v1594 = vsel %vm1570, %v1567, 0
        %1596 = vmatpush.bf16.xpose.msra.mxu0 0
        %1597 = vmatpush.bf16.xpose.msra.mxu0 0
        %1598 = vmatpush.bf16.xpose.msra.mxu0 0
        %1599 = vmatpush.bf16.xpose.msra.mxu0 0
        %1600 = vmatpush.bf16.xpose.msra.mxu0 0
        %1601 = vmatpush.bf16.xpose.msra.mxu0 0
        %1602 = vmatpush.bf16.xpose.msra.mxu0 0
        %1603 = vmatpush.bf16.xpose.msra.mxu0 %v1594
        %1604 = vmatmul.bf16.gmra.mxu0 %v1591
        %v1605 = vpop.f32.mrf.mxu0
        %v1606 = vadd.f32 0.0, %v1605
        %v1607 = vpop.f32.mrf.mxu0
        %1608 = vdwg.mxu0
        %v1610 = vsel %vm1570, %v1564, 0
        %v1613 = vsel %vm1570, %v1568, 0
        %1615 = vmatpush.bf16.xpose.msra.mxu0 0
        %1616 = vmatpush.bf16.xpose.msra.mxu0 0
        %1617 = vmatpush.bf16.xpose.msra.mxu0 0
        %1618 = vmatpush.bf16.xpose.msra.mxu0 0
        %1619 = vmatpush.bf16.xpose.msra.mxu0 0
        %1620 = vmatpush.bf16.xpose.msra.mxu0 0
        %1621 = vmatpush.bf16.xpose.msra.mxu0 0
        %1622 = vmatpush.bf16.xpose.msra.mxu0 %v1613
        %1623 = vmatmul.bf16.gmra.mxu0 %v1610
        %v1624 = vpop.f32.mrf.mxu0
        %v1625 = vadd.f32 0.0, %v1624
        %v1626 = vpop.f32.mrf.mxu0
        %1627 = vdwg.mxu0
        %v1629 = vsel %vm1570, %v1565, 0
        %v1632 = vsel %vm1570, %v1569, 0
        %1634 = vmatpush.bf16.xpose.msra.mxu0 0
        %1635 = vmatpush.bf16.xpose.msra.mxu0 0
        %1636 = vmatpush.bf16.xpose.msra.mxu0 0
        %1637 = vmatpush.bf16.xpose.msra.mxu0 0
        %1638 = vmatpush.bf16.xpose.msra.mxu0 0
        %1639 = vmatpush.bf16.xpose.msra.mxu0 0
        %1640 = vmatpush.bf16.xpose.msra.mxu0 0
        %1641 = vmatpush.bf16.xpose.msra.mxu0 %v1632
        %1642 = vmatmul.bf16.gmra.mxu0 %v1629
        %v1643 = vpop.f32.mrf.mxu0
        %v1644 = vadd.f32 0.0, %v1643
        %v1645 = vpop.f32.mrf.mxu0
        %1646 = vdwg.mxu0
        %v1647 = vlaneseq
        %v1648 = vshrl.u32 %v1647, 7
        %v1649 = vlaneseq
        %v1650 = vand.u32 %v1649, 127
        %vm1651 = vcmp.le.s32.totalorder %v1650, %v1648
        %v1652 = vsel %vm1651, 1, 0
        %vm1653 = vcmp.eq.s32.totalorder %v1652, 1
        %v1654 = vsel %vm1653, %v1587, -inf
        %v1655 = vsel %vm1653, %v1606, -inf
        %v1656 = vsel %vm1653, %v1625, -inf
        %v1657 = vsel %vm1653, %v1644, -inf
        %vm1658 = vcmask 64512
        %v1659 = vsel %vm1658, %v1654, -inf
        %1660 = vmax.xlane.f32.xlu0 %v1659
        %v1661 = vpop.xlane.xlu0 %1660
        %v1662 = vsel %vm1658, %v1655, -inf
        %1663 = vmax.xlane.f32.xlu0 %v1662
        %v1664 = vpop.xlane.xlu0 %1663
        %v1665 = vsel %vm1658, %v1656, -inf
        %1666 = vmax.xlane.f32.xlu0 %v1665
        %v1667 = vpop.xlane.xlu0 %1666
        %v1668 = vsel %vm1658, %v1657, -inf
        %1669 = vmax.xlane.f32.xlu0 %v1668
        %v1670 = vpop.xlane.xlu0 %1669
        %v1671 = vsub.f32 %v1654, %v1661
        %v1672 = vsub.f32 %v1655, %v1664
        %v1673 = vsub.f32 %v1656, %v1667
        %v1674 = vsub.f32 %v1657, %v1670
        %v1675 = vmul.f32 %v1671, 1.442695
        %v1676 = vpow.pop %v1675
        %v1677 = vmul.f32 %v1672, 1.442695
        %v1678 = vpow.pop %v1677
        %v1679 = vmul.f32 %v1673, 1.442695
        %v1680 = vpow.pop %v1679
        %v1681 = vmul.f32 %v1674, 1.442695
        %v1682 = vpow.pop %v1681
        %v1683 = vsel %vm1658, %v1676, 0.0
        %1684 = vadd.xlane.f32.xlu0 %v1683
        %v1685 = vpop.xlane.xlu0 %1684
        %v1686 = vsel %vm1658, %v1678, 0.0
        %1687 = vadd.xlane.f32.xlu0 %v1686
        %v1688 = vpop.xlane.xlu0 %1687
        %v1689 = vsel %vm1658, %v1680, 0.0
        %1690 = vadd.xlane.f32.xlu0 %v1689
        %v1691 = vpop.xlane.xlu0 %1690
        %v1692 = vsel %vm1658, %v1682, 0.0
        %1693 = vadd.xlane.f32.xlu0 %v1692
        %v1694 = vpop.xlane.xlu0 %1693
        %v1695 = vpack.c.bf16 %v1676, %v1676
        %v1696 = vpack.c.bf16 %v1678, %v1678
        %v1697 = vpack.c.bf16 %v1680, %v1680
        %v1698 = vpack.c.bf16 %v1682, %v1682
        %v1699 = vpack.c.bf16 %v1376, %v1376
        %v1700 = vpack.c.bf16 %v1437, %v1437
        %v1701 = vpack.c.bf16 %v1498, %v1498
        %v1702 = vpack.c.bf16 %v1559, %v1559
        %v1704 = vsel %vm1658, %v1695, 0
        %vm1706 = vcmask 1043456
        %v1708 = vsel %vm1706, %v1699, 0
        %1710 = vmatpush.bf16.msra.mxu0 0
        %1711 = vmatpush.bf16.msra.mxu0 0
        %1712 = vmatpush.bf16.msra.mxu0 0
        %1713 = vmatpush.bf16.msra.mxu0 0
        %1714 = vmatpush.bf16.msra.mxu0 0
        %1715 = vmatpush.bf16.msra.mxu0 0
        %1716 = vmatpush.bf16.msra.mxu0 0
        %1717 = vmatpush.bf16.msra.mxu0 %v1708
        %1718 = vmatmul.bf16.gmra.mxu0 %v1704
        %v1719 = vpop.f32.mrf.mxu0
        %v1720 = vadd.f32 0.0, %v1719
        %v1721 = vpop.f32.mrf.mxu0
        %1722 = vdwg.mxu0
        %v1724 = vsel %vm1658, %v1696, 0
        %v1727 = vsel %vm1706, %v1700, 0
        %1729 = vmatpush.bf16.msra.mxu0 0
        %1730 = vmatpush.bf16.msra.mxu0 0
        %1731 = vmatpush.bf16.msra.mxu0 0
        %1732 = vmatpush.bf16.msra.mxu0 0
        %1733 = vmatpush.bf16.msra.mxu0 0
        %1734 = vmatpush.bf16.msra.mxu0 0
        %1735 = vmatpush.bf16.msra.mxu0 0
        %1736 = vmatpush.bf16.msra.mxu0 %v1727
        %1737 = vmatmul.bf16.gmra.mxu0 %v1724
        %v1738 = vpop.f32.mrf.mxu0
        %v1739 = vadd.f32 0.0, %v1738
        %v1740 = vpop.f32.mrf.mxu0
        %1741 = vdwg.mxu0
        %v1743 = vsel %vm1658, %v1697, 0
        %v1746 = vsel %vm1706, %v1701, 0
        %1748 = vmatpush.bf16.msra.mxu0 0
        %1749 = vmatpush.bf16.msra.mxu0 0
        %1750 = vmatpush.bf16.msra.mxu0 0
        %1751 = vmatpush.bf16.msra.mxu0 0
        %1752 = vmatpush.bf16.msra.mxu0 0
        %1753 = vmatpush.bf16.msra.mxu0 0
        %1754 = vmatpush.bf16.msra.mxu0 0
        %1755 = vmatpush.bf16.msra.mxu0 %v1746
        %1756 = vmatmul.bf16.gmra.mxu0 %v1743
        %v1757 = vpop.f32.mrf.mxu0
        %v1758 = vadd.f32 0.0, %v1757
        %v1759 = vpop.f32.mrf.mxu0
        %1760 = vdwg.mxu0
        %v1762 = vsel %vm1658, %v1698, 0
        %v1765 = vsel %vm1706, %v1702, 0
        %1767 = vmatpush.bf16.msra.mxu0 0
        %1768 = vmatpush.bf16.msra.mxu0 0
        %1769 = vmatpush.bf16.msra.mxu0 0
        %1770 = vmatpush.bf16.msra.mxu0 0
        %1771 = vmatpush.bf16.msra.mxu0 0
        %1772 = vmatpush.bf16.msra.mxu0 0
        %1773 = vmatpush.bf16.msra.mxu0 0
        %1774 = vmatpush.bf16.msra.mxu0 %v1765
        %1775 = vmatmul.bf16.gmra.mxu0 %v1762
        %v1776 = vpop.f32.mrf.mxu0
        %v1777 = vadd.f32 0.0, %v1776
        %v1778 = vpop.f32.mrf.mxu0
        %1779 = vdwg.mxu0
        %v1780 = vrcp.pop %v1685
        %v1781 = vrcp.pop %v1688
        %v1782 = vrcp.pop %v1691
        %v1783 = vrcp.pop %v1694
        %v1784 = vmul.f32 %v1720, %v1780
        %v1785 = vmul.f32 %v1739, %v1781
        %v1786 = vmul.f32 %v1758, %v1782
        %v1787 = vmul.f32 %v1777, %v1783
        %v1788 = vpack.c.bf16 %v1784, %v1784
        %v1789 = vpack.c.bf16 %v1785, %v1785
        %v1790 = vpack.c.bf16 %v1786, %v1786
        %v1791 = vpack.c.bf16 %v1787, %v1787
        %v1792 = vld [vmem:[%s9] sm:$0xf]
        %v1793 = vld [vmem:[%s9 + $0x4] sm:$0xf]
        %v1794 = vld [vmem:[%s9 + $0x8] sm:$0xf]
        %v1795 = vld [vmem:[%s9 + $0xc] sm:$0xf]
        %v1796 = vld [vmem:[%s9 + $0x10] sm:$0xf]
        %v1797 = vld [vmem:[%s9 + $0x14] sm:$0xf]
        %v1798 = vld [vmem:[%s9 + $0x18] sm:$0xf]
        %v1799 = vld [vmem:[%s9 + $0x1c] sm:$0xf]
        %v1800 = vld [vmem:[%s9 + $0x20] sm:$0xf]
        %v1801 = vld [vmem:[%s9 + $0x24] sm:$0xf]
        %v1802 = vld [vmem:[%s9 + $0x28] sm:$0xf]
        %v1803 = vld [vmem:[%s9 + $0x2c] sm:$0xf]
        %v1804 = vld [vmem:[%s9 + $0x30] sm:$0xf]
        %v1805 = vld [vmem:[%s9 + $0x34] sm:$0xf]
        %v1806 = vld [vmem:[%s9 + $0x38] sm:$0xf]
        %v1807 = vld [vmem:[%s9 + $0x3c] sm:$0xf]
        %v1812 = vunpack.c.l.b16 %v1792
        %v1813 = vunpack.c.l.b16 %v1793
        %v1814 = vunpack.c.l.b16 %v1794
        %v1815 = vunpack.c.l.b16 %v1795
        %v1816 = vpack.c.b16 %v1813, %v1812
        %v1817 = vpack.c.b16 %v1815, %v1814
        %v1821 = vsel %vm1570, %v1788, 0
        %1823 = vmatpush.bf16.msra.mxu0 0
        %1824 = vmatpush.bf16.msra.mxu0 0
        %1825 = vmatpush.bf16.msra.mxu0 0
        %1826 = vmatpush.bf16.msra.mxu0 0
        %1827 = vmatpush.bf16.msra.mxu0 0
        %1828 = vmatpush.bf16.msra.mxu0 0
        %1829 = vmatpush.bf16.msra.mxu0 %v1817
        %1830 = vmatpush.bf16.msra.mxu0 %v1816
        %1831 = vmatmul.bf16.gmra.mxu0 %v1821
        %v1832 = vpop.f32.mrf.mxu0
        %v1833 = vadd.f32 0.0, %v1832
        %v1834 = vpop.f32.mrf.mxu0
        %1835 = vdwg.mxu0
        %v1840 = vunpack.c.l.b16 %v1796
        %v1841 = vunpack.c.l.b16 %v1797
        %v1842 = vunpack.c.l.b16 %v1798
        %v1843 = vunpack.c.l.b16 %v1799
        %v1844 = vpack.c.b16 %v1841, %v1840
        %v1845 = vpack.c.b16 %v1843, %v1842
        %v1849 = vsel %vm1570, %v1789, 0
        %1851 = vmatpush.bf16.msra.mxu0 0
        %1852 = vmatpush.bf16.msra.mxu0 0
        %1853 = vmatpush.bf16.msra.mxu0 0
        %1854 = vmatpush.bf16.msra.mxu0 0
        %1855 = vmatpush.bf16.msra.mxu0 0
        %1856 = vmatpush.bf16.msra.mxu0 0
        %1857 = vmatpush.bf16.msra.mxu0 %v1845
        %1858 = vmatpush.bf16.msra.mxu0 %v1844
        %1859 = vmatmul.bf16.gmra.mxu0 %v1849
        %v1860 = vpop.f32.mrf.mxu0
        %v1861 = vadd.f32 0.0, %v1860
        %v1862 = vpop.f32.mrf.mxu0
        %1863 = vdwg.mxu0
        %v1868 = vunpack.c.l.b16 %v1800
        %v1869 = vunpack.c.l.b16 %v1801
        %v1870 = vunpack.c.l.b16 %v1802
        %v1871 = vunpack.c.l.b16 %v1803
        %v1872 = vpack.c.b16 %v1869, %v1868
        %v1873 = vpack.c.b16 %v1871, %v1870
        %v1877 = vsel %vm1570, %v1790, 0
        %1879 = vmatpush.bf16.msra.mxu0 0
        %1880 = vmatpush.bf16.msra.mxu0 0
        %1881 = vmatpush.bf16.msra.mxu0 0
        %1882 = vmatpush.bf16.msra.mxu0 0
        %1883 = vmatpush.bf16.msra.mxu0 0
        %1884 = vmatpush.bf16.msra.mxu0 0
        %1885 = vmatpush.bf16.msra.mxu0 %v1873
        %1886 = vmatpush.bf16.msra.mxu0 %v1872
        %1887 = vmatmul.bf16.gmra.mxu0 %v1877
        %v1888 = vpop.f32.mrf.mxu0
        %v1889 = vadd.f32 0.0, %v1888
        %v1890 = vpop.f32.mrf.mxu0
        %1891 = vdwg.mxu0
        %v1896 = vunpack.c.l.b16 %v1804
        %v1897 = vunpack.c.l.b16 %v1805
        %v1898 = vunpack.c.l.b16 %v1806
        %v1899 = vunpack.c.l.b16 %v1807
        %v1900 = vpack.c.b16 %v1897, %v1896
        %v1901 = vpack.c.b16 %v1899, %v1898
        %v1905 = vsel %vm1570, %v1791, 0
        %1907 = vmatpush.bf16.msra.mxu0 0
        %1908 = vmatpush.bf16.msra.mxu0 0
        %1909 = vmatpush.bf16.msra.mxu0 0
        %1910 = vmatpush.bf16.msra.mxu0 0
        %1911 = vmatpush.bf16.msra.mxu0 0
        %1912 = vmatpush.bf16.msra.mxu0 0
        %1913 = vmatpush.bf16.msra.mxu0 %v1901
        %1914 = vmatpush.bf16.msra.mxu0 %v1900
        %1915 = vmatmul.bf16.gmra.mxu0 %v1905
        %v1916 = vpop.f32.mrf.mxu0
        %v1917 = vadd.f32 0.0, %v1916
        %v1918 = vpop.f32.mrf.mxu0
        %1919 = vdwg.mxu0
        %v1920 = vadd.f32 %v1833, %v1861
        %v1921 = vadd.f32 %v1920, %v1889
        %v1922 = vadd.f32 %v1921, %v1917
        %v1923 = vld [vmem:[%s10] sm:$0x1]
        %v1925 = vperm.slane %v1923, 0
        %v1927 = vadd.f32 %v1922, %v1925
        %v1928 = vadd.f32 %v545, %v1927
        %v1929 = vld [vmem:[%s11] sm:$0x1]
        %v1930 = vld [vmem:[%s12] sm:$0x1]
        %1931 = vadd.xlane.f32.xlu0 %v1928
        %v1932 = vpop.xlane.xlu0 %1931
        %v1933 = vmul.f32 %v1932, %v556
        %v1934 = vmul.f32 %v1928, %v1928
        %1935 = vadd.xlane.f32.xlu0 %v1934
        %v1936 = vpop.xlane.xlu0 %1935
        %v1937 = vmul.f32 %v1936, %v556
        %v1938 = vmul.f32 %v1933, %v1933
        %v1939 = vsub.f32 %v1937, %v1938
        %v1940 = vsub.f32 %v1928, %v1933
        %v1941 = vadd.f32 %v1939, 1e-05
        %v1942 = vrsqrt.pop %v1941
        %v1943 = vmul.f32 %v1942, %v1941
        %v1944 = vmul.f32 %v1943, %v1942
        %v1945 = vmul.f32 0.5, %v1944
        %v1946 = vsub.f32 1.5, %v1945
        %v1947 = vmul.f32 %v1942, %v1946
        %vm1948 = vweird.f32 %v1941
        %vm1949 = vweird.f32 %v1942
        %vm1950 = vmor %vm1948, %vm1949
        %v1951 = vsel %vm1950, %v1942, %v1947
        %v1952 = vmul.f32 %v1940, %v1951
        %v1954 = vperm.slane %v1929, 0
        %v1956 = vmul.f32 %v1952, %v1954
        %v1958 = vperm.slane %v1930, 0
        %v1960 = vadd.f32 %v1956, %v1958
        %v1961 = vpack.c.bf16 %v1960, %v1960
        %v1962 = vld [vmem:[%s13] sm:$0xff]
        %v1963 = vld [vmem:[%s13 + $0x8] sm:$0xff]
        %v1964 = vld [vmem:[%s13 + $0x10] sm:$0xff]
        %v1965 = vld [vmem:[%s13 + $0x18] sm:$0xff]
        %v1966 = vld [vmem:[%s13 + $0x20] sm:$0xff]
        %v1967 = vld [vmem:[%s13 + $0x28] sm:$0xff]
        %v1968 = vld [vmem:[%s13 + $0x30] sm:$0xff]
        %v1969 = vld [vmem:[%s13 + $0x38] sm:$0xff]
        %v1970 = vld [vmem:[%s13 + $0x40] sm:$0xff]
        %v1971 = vld [vmem:[%s13 + $0x48] sm:$0xff]
        %v1972 = vld [vmem:[%s13 + $0x50] sm:$0xff]
        %v1973 = vld [vmem:[%s13 + $0x58] sm:$0xff]
        %v1974 = vld [vmem:[%s13 + $0x60] sm:$0xff]
        %v1975 = vld [vmem:[%s13 + $0x68] sm:$0xff]
        %v1976 = vld [vmem:[%s13 + $0x70] sm:$0xff]
        %v1977 = vld [vmem:[%s13 + $0x78] sm:$0xff]
        %v1978 = vld [vmem:[%s13 + $0x80] sm:$0xff]
        %v1979 = vld [vmem:[%s13 + $0x88] sm:$0xff]
        %v1980 = vld [vmem:[%s13 + $0x90] sm:$0xff]
        %v1981 = vld [vmem:[%s13 + $0x98] sm:$0xff]
        %v1982 = vld [vmem:[%s13 + $0xa0] sm:$0xff]
        %v1983 = vld [vmem:[%s13 + $0xa8] sm:$0xff]
        %v1984 = vld [vmem:[%s13 + $0xb0] sm:$0xff]
        %v1985 = vld [vmem:[%s13 + $0xb8] sm:$0xff]
        %v1986 = vld [vmem:[%s13 + $0xc0] sm:$0xff]
        %v1987 = vld [vmem:[%s13 + $0xc8] sm:$0xff]
        %v1988 = vld [vmem:[%s13 + $0xd0] sm:$0xff]
        %v1989 = vld [vmem:[%s13 + $0xd8] sm:$0xff]
        %v1990 = vld [vmem:[%s13 + $0xe0] sm:$0xff]
        %v1991 = vld [vmem:[%s13 + $0xe8] sm:$0xff]
        %v1992 = vld [vmem:[%s13 + $0xf0] sm:$0xff]
        %v1993 = vld [vmem:[%s13 + $0xf8] sm:$0xff]
        %v1994 = vld [vmem:[%s14] sm:$0xf]
        %v1996 = vperm.slane %v1994, 0
        %v1997 = vperm.slane %v1994, 1
        %v1998 = vperm.slane %v1994, 2
        %v1999 = vperm.slane %v1994, 3
        %v2036 = vunpack.c.l.b16 %v1962
        %v2037 = vunpack.c.h.b16 %v1962
        %v2038 = vunpack.c.l.b16 %v1963
        %v2039 = vunpack.c.h.b16 %v1963
        %v2040 = vunpack.c.l.b16 %v1964
        %v2041 = vunpack.c.h.b16 %v1964
        %v2042 = vunpack.c.l.b16 %v1965
        %v2043 = vunpack.c.h.b16 %v1965
        %v2044 = vunpack.c.l.b16 %v1966
        %v2045 = vunpack.c.h.b16 %v1966
        %v2046 = vunpack.c.l.b16 %v1967
        %v2047 = vunpack.c.h.b16 %v1967
        %v2048 = vunpack.c.l.b16 %v1968
        %v2049 = vunpack.c.h.b16 %v1968
        %v2050 = vunpack.c.l.b16 %v1969
        %v2051 = vunpack.c.h.b16 %v1969
        %v2052 = vunpack.c.l.b16 %v1970
        %v2053 = vunpack.c.h.b16 %v1970
        %v2054 = vunpack.c.l.b16 %v1971
        %v2055 = vunpack.c.h.b16 %v1971
        %v2056 = vunpack.c.l.b16 %v1972
        %v2057 = vunpack.c.h.b16 %v1972
        %v2058 = vunpack.c.l.b16 %v1973
        %v2059 = vunpack.c.h.b16 %v1973
        %v2060 = vunpack.c.l.b16 %v1974
        %v2061 = vunpack.c.h.b16 %v1974
        %v2062 = vunpack.c.l.b16 %v1975
        %v2063 = vunpack.c.h.b16 %v1975
        %v2064 = vunpack.c.l.b16 %v1976
        %v2065 = vunpack.c.h.b16 %v1976
        %v2066 = vunpack.c.l.b16 %v1977
        %v2067 = vunpack.c.h.b16 %v1977
        %v2068 = vunpack.c.l.b16 %v1978
        %v2069 = vunpack.c.h.b16 %v1978
        %v2070 = vunpack.c.l.b16 %v1979
        %v2071 = vunpack.c.h.b16 %v1979
        %v2072 = vunpack.c.l.b16 %v1980
        %v2073 = vunpack.c.h.b16 %v1980
        %v2074 = vunpack.c.l.b16 %v1981
        %v2075 = vunpack.c.h.b16 %v1981
        %v2076 = vunpack.c.l.b16 %v1982
        %v2077 = vunpack.c.h.b16 %v1982
        %v2078 = vunpack.c.l.b16 %v1983
        %v2079 = vunpack.c.h.b16 %v1983
        %v2080 = vunpack.c.l.b16 %v1984
        %v2081 = vunpack.c.h.b16 %v1984
        %v2082 = vunpack.c.l.b16 %v1985
        %v2083 = vunpack.c.h.b16 %v1985
        %v2084 = vunpack.c.l.b16 %v1986
        %v2085 = vunpack.c.h.b16 %v1986
        %v2086 = vunpack.c.l.b16 %v1987
        %v2087 = vunpack.c.h.b16 %v1987
        %v2088 = vunpack.c.l.b16 %v1988
        %v2089 = vunpack.c.h.b16 %v1988
        %v2090 = vunpack.c.l.b16 %v1989
        %v2091 = vunpack.c.h.b16 %v1989
        %v2092 = vunpack.c.l.b16 %v1990
        %v2093 = vunpack.c.h.b16 %v1990
        %v2094 = vunpack.c.l.b16 %v1991
        %v2095 = vunpack.c.h.b16 %v1991
        %v2096 = vunpack.c.l.b16 %v1992
        %v2097 = vunpack.c.h.b16 %v1992
        %v2098 = vunpack.c.l.b16 %v1993
        %v2099 = vunpack.c.h.b16 %v1993
        %v2100 = vpack.c.b16 %v2040, %v2036
        %v2101 = vpack.c.b16 %v2041, %v2037
        %v2102 = vpack.c.b16 %v2042, %v2038
        %v2103 = vpack.c.b16 %v2043, %v2039
        %v2104 = vpack.c.b16 %v2048, %v2044
        %v2105 = vpack.c.b16 %v2049, %v2045
        %v2106 = vpack.c.b16 %v2050, %v2046
        %v2107 = vpack.c.b16 %v2051, %v2047
        %v2108 = vpack.c.b16 %v2056, %v2052
        %v2109 = vpack.c.b16 %v2057, %v2053
        %v2110 = vpack.c.b16 %v2058, %v2054
        %v2111 = vpack.c.b16 %v2059, %v2055
        %v2112 = vpack.c.b16 %v2064, %v2060
        %v2113 = vpack.c.b16 %v2065, %v2061
        %v2114 = vpack.c.b16 %v2066, %v2062
        %v2115 = vpack.c.b16 %v2067, %v2063
        %v2116 = vpack.c.b16 %v2072, %v2068
        %v2117 = vpack.c.b16 %v2073, %v2069
        %v2118 = vpack.c.b16 %v2074, %v2070
        %v2119 = vpack.c.b16 %v2075, %v2071
        %v2120 = vpack.c.b16 %v2080, %v2076
        %v2121 = vpack.c.b16 %v2081, %v2077
        %v2122 = vpack.c.b16 %v2082, %v2078
        %v2123 = vpack.c.b16 %v2083, %v2079
        %v2124 = vpack.c.b16 %v2088, %v2084
        %v2125 = vpack.c.b16 %v2089, %v2085
        %v2126 = vpack.c.b16 %v2090, %v2086
        %v2127 = vpack.c.b16 %v2091, %v2087
        %v2128 = vpack.c.b16 %v2096, %v2092
        %v2129 = vpack.c.b16 %v2097, %v2093
        %v2130 = vpack.c.b16 %v2098, %v2094
        %v2131 = vpack.c.b16 %v2099, %v2095
        %2164 = vmatpush.bf16.msra.mxu0 %v2128
        %2165 = vmatpush.bf16.msra.mxu0 %v2124
        %2166 = vmatpush.bf16.msra.mxu0 %v2120
        %2167 = vmatpush.bf16.msra.mxu0 %v2116
        %2168 = vmatpush.bf16.msra.mxu0 %v2112
        %2169 = vmatpush.bf16.msra.mxu0 %v2108
        %2170 = vmatpush.bf16.msra.mxu0 %v2104
        %2171 = vmatpush.bf16.msra.mxu0 %v2100
        %2172 = vmatmul.bf16.gmra.mxu0 %v1961
        %v2173 = vpop.f32.mrf.mxu0
        %v2174 = vadd.f32 %v1996, %v2173
        %v2175 = vpop.f32.mrf.mxu0
        %2176 = vdwg.mxu0
        %2177 = vmatpush.bf16.msra.mxu0 %v2129
        %2178 = vmatpush.bf16.msra.mxu0 %v2125
        %2179 = vmatpush.bf16.msra.mxu0 %v2121
        %2180 = vmatpush.bf16.msra.mxu0 %v2117
        %2181 = vmatpush.bf16.msra.mxu0 %v2113
        %2182 = vmatpush.bf16.msra.mxu0 %v2109
        %2183 = vmatpush.bf16.msra.mxu0 %v2105
        %2184 = vmatpush.bf16.msra.mxu0 %v2101
        %2185 = vmatmul.bf16.gmra.mxu0 %v1961
        %v2186 = vpop.f32.mrf.mxu0
        %v2187 = vadd.f32 %v1997, %v2186
        %v2188 = vpop.f32.mrf.mxu0
        %2189 = vdwg.mxu0
        %2190 = vmatpush.bf16.msra.mxu0 %v2130
        %2191 = vmatpush.bf16.msra.mxu0 %v2126
        %2192 = vmatpush.bf16.msra.mxu0 %v2122
        %2193 = vmatpush.bf16.msra.mxu0 %v2118
        %2194 = vmatpush.bf16.msra.mxu0 %v2114
        %2195 = vmatpush.bf16.msra.mxu0 %v2110
        %2196 = vmatpush.bf16.msra.mxu0 %v2106
        %2197 = vmatpush.bf16.msra.mxu0 %v2102
        %2198 = vmatmul.bf16.gmra.mxu0 %v1961
        %v2199 = vpop.f32.mrf.mxu0
        %v2200 = vadd.f32 %v1998, %v2199
        %v2201 = vpop.f32.mrf.mxu0
        %2202 = vdwg.mxu0
        %2203 = vmatpush.bf16.msra.mxu0 %v2131
        %2204 = vmatpush.bf16.msra.mxu0 %v2127
        %2205 = vmatpush.bf16.msra.mxu0 %v2123
        %2206 = vmatpush.bf16.msra.mxu0 %v2119
        %2207 = vmatpush.bf16.msra.mxu0 %v2115
        %2208 = vmatpush.bf16.msra.mxu0 %v2111
        %2209 = vmatpush.bf16.msra.mxu0 %v2107
        %2210 = vmatpush.bf16.msra.mxu0 %v2103
        %2211 = vmatmul.bf16.gmra.mxu0 %v1961
        %v2212 = vpop.f32.mrf.mxu0
        %v2213 = vadd.f32 %v1999, %v2212
        %v2214 = vpop.f32.mrf.mxu0
        %2215 = vdwg.mxu0
        %v2216 = vmul.f32 %v2174, 0.5
        %v2217 = vmul.f32 %v2187, 0.5
        %v2218 = vmul.f32 %v2200, 0.5
        %v2219 = vmul.f32 %v2213, 0.5
        %v2220 = vmul.f32 %v2174, 0.044715
        %v2221 = vmul.f32 %v2187, 0.044715
        %v2222 = vmul.f32 %v2200, 0.044715
        %v2223 = vmul.f32 %v2213, 0.044715
        %v2224 = vmul.f32 %v2220, %v2174
        %v2225 = vmul.f32 %v2221, %v2187
        %v2226 = vmul.f32 %v2222, %v2200
        %v2227 = vmul.f32 %v2223, %v2213
        %v2228 = vmul.f32 %v2224, %v2174
        %v2229 = vmul.f32 %v2225, %v2187
        %v2230 = vmul.f32 %v2226, %v2200
        %v2231 = vmul.f32 %v2227, %v2213
        %v2232 = vadd.f32 %v2174, %v2228
        %v2233 = vadd.f32 %v2187, %v2229
        %v2234 = vadd.f32 %v2200, %v2230
        %v2235 = vadd.f32 %v2213, %v2231
        %v2236 = vmul.f32 %v2232, 0.7978846
        %v2237 = vmul.f32 %v2233, 0.7978846
        %v2238 = vmul.f32 %v2234, 0.7978846
        %v2239 = vmul.f32 %v2235, 0.7978846
        %v2240 = vtanh.pop %v2236
        %v2241 = vtanh.pop %v2237
        %v2242 = vtanh.pop %v2238
        %v2243 = vtanh.pop %v2239
        %v2244 = vadd.f32 %v2240, 1.0
        %v2245 = vadd.f32 %v2241, 1.0
        %v2246 = vadd.f32 %v2242, 1.0
        %v2247 = vadd.f32 %v2243, 1.0
        %v2248 = vmul.f32 %v2216, %v2244
        %v2249 = vmul.f32 %v2217, %v2245
        %v2250 = vmul.f32 %v2218, %v2246
        %v2251 = vmul.f32 %v2219, %v2247
        %v2252 = vpack.c.bf16 %v2248, %v2248
        %v2253 = vpack.c.bf16 %v2249, %v2249
        %v2254 = vpack.c.bf16 %v2250, %v2250
        %v2255 = vpack.c.bf16 %v2251, %v2251
        %v2256 = vld [vmem:[%s15] sm:$0xf]
        %v2257 = vld [vmem:[%s15 + $0x4] sm:$0xf]
        %v2258 = vld [vmem:[%s15 + $0x8] sm:$0xf]
        %v2259 = vld [vmem:[%s15 + $0xc] sm:$0xf]
        %v2260 = vld [vmem:[%s15 + $0x10] sm:$0xf]
        %v2261 = vld [vmem:[%s15 + $0x14] sm:$0xf]
        %v2262 = vld [vmem:[%s15 + $0x18] sm:$0xf]
        %v2263 = vld [vmem:[%s15 + $0x1c] sm:$0xf]
        %v2264 = vld [vmem:[%s15 + $0x20] sm:$0xf]
        %v2265 = vld [vmem:[%s15 + $0x24] sm:$0xf]
        %v2266 = vld [vmem:[%s15 + $0x28] sm:$0xf]
        %v2267 = vld [vmem:[%s15 + $0x2c] sm:$0xf]
        %v2268 = vld [vmem:[%s15 + $0x30] sm:$0xf]
        %v2269 = vld [vmem:[%s15 + $0x34] sm:$0xf]
        %v2270 = vld [vmem:[%s15 + $0x38] sm:$0xf]
        %v2271 = vld [vmem:[%s15 + $0x3c] sm:$0xf]
        %v2272 = vld [vmem:[%s15 + $0x40] sm:$0xf]
        %v2273 = vld [vmem:[%s15 + $0x44] sm:$0xf]
        %v2274 = vld [vmem:[%s15 + $0x48] sm:$0xf]
        %v2275 = vld [vmem:[%s15 + $0x4c] sm:$0xf]
        %v2276 = vld [vmem:[%s15 + $0x50] sm:$0xf]
        %v2277 = vld [vmem:[%s15 + $0x54] sm:$0xf]
        %v2278 = vld [vmem:[%s15 + $0x58] sm:$0xf]
        %v2279 = vld [vmem:[%s15 + $0x5c] sm:$0xf]
        %v2280 = vld [vmem:[%s15 + $0x60] sm:$0xf]
        %v2281 = vld [vmem:[%s15 + $0x64] sm:$0xf]
        %v2282 = vld [vmem:[%s15 + $0x68] sm:$0xf]
        %v2283 = vld [vmem:[%s15 + $0x6c] sm:$0xf]
        %v2284 = vld [vmem:[%s15 + $0x70] sm:$0xf]
        %v2285 = vld [vmem:[%s15 + $0x74] sm:$0xf]
        %v2286 = vld [vmem:[%s15 + $0x78] sm:$0xf]
        %v2287 = vld [vmem:[%s15 + $0x7c] sm:$0xf]
        %v2288 = vld [vmem:[%s15 + $0x80] sm:$0xf]
        %v2289 = vld [vmem:[%s15 + $0x84] sm:$0xf]
        %v2290 = vld [vmem:[%s15 + $0x88] sm:$0xf]
        %v2291 = vld [vmem:[%s15 + $0x8c] sm:$0xf]
        %v2292 = vld [vmem:[%s15 + $0x90] sm:$0xf]
        %v2293 = vld [vmem:[%s15 + $0x94] sm:$0xf]
        %v2294 = vld [vmem:[%s15 + $0x98] sm:$0xf]
        %v2295 = vld [vmem:[%s15 + $0x9c] sm:$0xf]
        %v2296 = vld [vmem:[%s15 + $0xa0] sm:$0xf]
        %v2297 = vld [vmem:[%s15 + $0xa4] sm:$0xf]
        %v2298 = vld [vmem:[%s15 + $0xa8] sm:$0xf]
        %v2299 = vld [vmem:[%s15 + $0xac] sm:$0xf]
        %v2300 = vld [vmem:[%s15 + $0xb0] sm:$0xf]
        %v2301 = vld [vmem:[%s15 + $0xb4] sm:$0xf]
        %v2302 = vld [vmem:[%s15 + $0xb8] sm:$0xf]
        %v2303 = vld [vmem:[%s15 + $0xbc] sm:$0xf]
        %v2304 = vld [vmem:[%s15 + $0xc0] sm:$0xf]
        %v2305 = vld [vmem:[%s15 + $0xc4] sm:$0xf]
        %v2306 = vld [vmem:[%s15 + $0xc8] sm:$0xf]
        %v2307 = vld [vmem:[%s15 + $0xcc] sm:$0xf]
        %v2308 = vld [vmem:[%s15 + $0xd0] sm:$0xf]
        %v2309 = vld [vmem:[%s15 + $0xd4] sm:$0xf]
        %v2310 = vld [vmem:[%s15 + $0xd8] sm:$0xf]
        %v2311 = vld [vmem:[%s15 + $0xdc] sm:$0xf]
        %v2312 = vld [vmem:[%s15 + $0xe0] sm:$0xf]
        %v2313 = vld [vmem:[%s15 + $0xe4] sm:$0xf]
        %v2314 = vld [vmem:[%s15 + $0xe8] sm:$0xf]
        %v2315 = vld [vmem:[%s15 + $0xec] sm:$0xf]
        %v2316 = vld [vmem:[%s15 + $0xf0] sm:$0xf]
        %v2317 = vld [vmem:[%s15 + $0xf4] sm:$0xf]
        %v2318 = vld [vmem:[%s15 + $0xf8] sm:$0xf]
        %v2319 = vld [vmem:[%s15 + $0xfc] sm:$0xf]
        %v2320 = vld [vmem:[%s16] sm:$0x1]
        %v2322 = vperm.slane %v2320, 0
        %v2388 = vunpack.c.l.b16 %v2256
        %v2389 = vunpack.c.l.b16 %v2257
        %v2390 = vunpack.c.l.b16 %v2258
        %v2391 = vunpack.c.l.b16 %v2259
        %v2392 = vunpack.c.l.b16 %v2260
        %v2393 = vunpack.c.l.b16 %v2261
        %v2394 = vunpack.c.l.b16 %v2262
        %v2395 = vunpack.c.l.b16 %v2263
        %v2396 = vunpack.c.l.b16 %v2264
        %v2397 = vunpack.c.l.b16 %v2265
        %v2398 = vunpack.c.l.b16 %v2266
        %v2399 = vunpack.c.l.b16 %v2267
        %v2400 = vunpack.c.l.b16 %v2268
        %v2401 = vunpack.c.l.b16 %v2269
        %v2402 = vunpack.c.l.b16 %v2270
        %v2403 = vunpack.c.l.b16 %v2271
        %v2404 = vunpack.c.l.b16 %v2272
        %v2405 = vunpack.c.l.b16 %v2273
        %v2406 = vunpack.c.l.b16 %v2274
        %v2407 = vunpack.c.l.b16 %v2275
        %v2408 = vunpack.c.l.b16 %v2276
        %v2409 = vunpack.c.l.b16 %v2277
        %v2410 = vunpack.c.l.b16 %v2278
        %v2411 = vunpack.c.l.b16 %v2279
        %v2412 = vunpack.c.l.b16 %v2280
        %v2413 = vunpack.c.l.b16 %v2281
        %v2414 = vunpack.c.l.b16 %v2282
        %v2415 = vunpack.c.l.b16 %v2283
        %v2416 = vunpack.c.l.b16 %v2284
        %v2417 = vunpack.c.l.b16 %v2285
        %v2418 = vunpack.c.l.b16 %v2286
        %v2419 = vunpack.c.l.b16 %v2287
        %v2420 = vunpack.c.l.b16 %v2288
        %v2421 = vunpack.c.l.b16 %v2289
        %v2422 = vunpack.c.l.b16 %v2290
        %v2423 = vunpack.c.l.b16 %v2291
        %v2424 = vunpack.c.l.b16 %v2292
        %v2425 = vunpack.c.l.b16 %v2293
        %v2426 = vunpack.c.l.b16 %v2294
        %v2427 = vunpack.c.l.b16 %v2295
        %v2428 = vunpack.c.l.b16 %v2296
        %v2429 = vunpack.c.l.b16 %v2297
        %v2430 = vunpack.c.l.b16 %v2298
        %v2431 = vunpack.c.l.b16 %v2299
        %v2432 = vunpack.c.l.b16 %v2300
        %v2433 = vunpack.c.l.b16 %v2301
        %v2434 = vunpack.c.l.b16 %v2302
        %v2435 = vunpack.c.l.b16 %v2303
        %v2436 = vunpack.c.l.b16 %v2304
        %v2437 = vunpack.c.l.b16 %v2305
        %v2438 = vunpack.c.l.b16 %v2306
        %v2439 = vunpack.c.l.b16 %v2307
        %v2440 = vunpack.c.l.b16 %v2308
        %v2441 = vunpack.c.l.b16 %v2309
        %v2442 = vunpack.c.l.b16 %v2310
        %v2443 = vunpack.c.l.b16 %v2311
        %v2444 = vunpack.c.l.b16 %v2312
        %v2445 = vunpack.c.l.b16 %v2313
        %v2446 = vunpack.c.l.b16 %v2314
        %v2447 = vunpack.c.l.b16 %v2315
        %v2448 = vunpack.c.l.b16 %v2316
        %v2449 = vunpack.c.l.b16 %v2317
        %v2450 = vunpack.c.l.b16 %v2318
        %v2451 = vunpack.c.l.b16 %v2319
        %v2452 = vpack.c.b16 %v2389, %v2388
        %v2453 = vpack.c.b16 %v2391, %v2390
        %v2454 = vpack.c.b16 %v2393, %v2392
        %v2455 = vpack.c.b16 %v2395, %v2394
        %v2456 = vpack.c.b16 %v2397, %v2396
        %v2457 = vpack.c.b16 %v2399, %v2398
        %v2458 = vpack.c.b16 %v2401, %v2400
        %v2459 = vpack.c.b16 %v2403, %v2402
        %v2460 = vpack.c.b16 %v2405, %v2404
        %v2461 = vpack.c.b16 %v2407, %v2406
        %v2462 = vpack.c.b16 %v2409, %v2408
        %v2463 = vpack.c.b16 %v2411, %v2410
        %v2464 = vpack.c.b16 %v2413, %v2412
        %v2465 = vpack.c.b16 %v2415, %v2414
        %v2466 = vpack.c.b16 %v2417, %v2416
        %v2467 = vpack.c.b16 %v2419, %v2418
        %v2468 = vpack.c.b16 %v2421, %v2420
        %v2469 = vpack.c.b16 %v2423, %v2422
        %v2470 = vpack.c.b16 %v2425, %v2424
        %v2471 = vpack.c.b16 %v2427, %v2426
        %v2472 = vpack.c.b16 %v2429, %v2428
        %v2473 = vpack.c.b16 %v2431, %v2430
        %v2474 = vpack.c.b16 %v2433, %v2432
        %v2475 = vpack.c.b16 %v2435, %v2434
        %v2476 = vpack.c.b16 %v2437, %v2436
        %v2477 = vpack.c.b16 %v2439, %v2438
        %v2478 = vpack.c.b16 %v2441, %v2440
        %v2479 = vpack.c.b16 %v2443, %v2442
        %v2480 = vpack.c.b16 %v2445, %v2444
        %v2481 = vpack.c.b16 %v2447, %v2446
        %v2482 = vpack.c.b16 %v2449, %v2448
        %v2483 = vpack.c.b16 %v2451, %v2450
        %2516 = vmatpush.bf16.msra.mxu0 %v2459
        %2517 = vmatpush.bf16.msra.mxu0 %v2458
        %2518 = vmatpush.bf16.msra.mxu0 %v2457
        %2519 = vmatpush.bf16.msra.mxu0 %v2456
        %2520 = vmatpush.bf16.msra.mxu0 %v2455
        %2521 = vmatpush.bf16.msra.mxu0 %v2454
        %2522 = vmatpush.bf16.msra.mxu0 %v2453
        %2523 = vmatpush.bf16.msra.mxu0 %v2452
        %2524 = vmatmul.bf16.gmra.mxu0 %v2252
        %v2525 = vpop.f32.mrf.mxu0
        %v2526 = vadd.f32 %v2322, %v2525
        %v2527 = vpop.f32.mrf.mxu0
        %2528 = vdwg.mxu0
        %2529 = vmatpush.bf16.msra.mxu0 %v2467
        %2530 = vmatpush.bf16.msra.mxu0 %v2466
        %2531 = vmatpush.bf16.msra.mxu0 %v2465
        %2532 = vmatpush.bf16.msra.mxu0 %v2464
        %2533 = vmatpush.bf16.msra.mxu0 %v2463
        %2534 = vmatpush.bf16.msra.mxu0 %v2462
        %2535 = vmatpush.bf16.msra.mxu0 %v2461
        %2536 = vmatpush.bf16.msra.mxu0 %v2460
        %2537 = vmatmul.bf16.gmra.mxu0 %v2253
        %v2538 = vpop.f32.mrf.mxu0
        %v2539 = vadd.f32 %v2526, %v2538
        %v2540 = vpop.f32.mrf.mxu0
        %2541 = vdwg.mxu0
        %2542 = vmatpush.bf16.msra.mxu0 %v2475
        %2543 = vmatpush.bf16.msra.mxu0 %v2474
        %2544 = vmatpush.bf16.msra.mxu0 %v2473
        %2545 = vmatpush.bf16.msra.mxu0 %v2472
        %2546 = vmatpush.bf16.msra.mxu0 %v2471
        %2547 = vmatpush.bf16.msra.mxu0 %v2470
        %2548 = vmatpush.bf16.msra.mxu0 %v2469
        %2549 = vmatpush.bf16.msra.mxu0 %v2468
        %2550 = vmatmul.bf16.gmra.mxu0 %v2254
        %v2551 = vpop.f32.mrf.mxu0
        %v2552 = vadd.f32 %v2539, %v2551
        %v2553 = vpop.f32.mrf.mxu0
        %2554 = vdwg.mxu0
        %2555 = vmatpush.bf16.msra.mxu0 %v2483
        %2556 = vmatpush.bf16.msra.mxu0 %v2482
        %2557 = vmatpush.bf16.msra.mxu0 %v2481
        %2558 = vmatpush.bf16.msra.mxu0 %v2480
        %2559 = vmatpush.bf16.msra.mxu0 %v2479
        %2560 = vmatpush.bf16.msra.mxu0 %v2478
        %2561 = vmatpush.bf16.msra.mxu0 %v2477
        %2562 = vmatpush.bf16.msra.mxu0 %v2476
        %2563 = vmatmul.bf16.gmra.mxu0 %v2255
        %v2564 = vpop.f32.mrf.mxu0
        %v2565 = vadd.f32 %v2552, %v2564
        %v2566 = vpop.f32.mrf.mxu0
        %2567 = vdwg.mxu0
        %v2568 = vadd.f32 %v1928, %v2565
        %2569 = vst [vmem:[%s539] sm:$0xff] %v2568
        %s2570 = sand.u32 %s401, 1
        %s2571 = scalar_lea.sflag [#allocation3], %s2570
        %s2572 = sand.u32 %s401, 1
        %s2573 = smul.addr %s2572, 8
        %s2574 = scalar_lea.vmem [#allocation2], %s2573
        // Predicated region
        $region89: #{tpu_custom_call.1} parent=87 // pred_check
          %p2575 = pneg %p411
        $region90: #{tpu_custom_call.1} parent=87 // pred_check_branch
          %2577 = sbr.rel (%p2575) target = $region92
        $region91: #{tpu_custom_call.1} parent=87 // pred_region
          %2579 = vsyncadd %s2571, 0
          %s2580 = smul.addr %s31, 8
          %s2581 = scalar_lea.hbm %s17, %s2580
          %s2583 = sshll.u32 %s2574, 4
          %s2584 = int_to_ptr.vmem [resolvable:$true] %s2583
          %s2585 = sshll.u32 %s2581, 4
          %s2586 = int_to_ptr.hbm [resolvable:$true] %s2585
          %2588 = dma.vmem_to_hbm [thread:$0]  %s2584, 128, %s2586, %s2571
        $region92: #{tpu_custom_call.1} parent=87 // pred_fallthru
          _
      $region88: #{tpu_custom_call.1} parent=5 // pred_fallthru
        _
      %p2589 = scmp.le.s32.totalorder 2, %s26
      // Predicated region
      $region93: #{tpu_custom_call.1} parent=5 // pred_check
        %p2590 = pneg %p2589
      $region94: #{tpu_custom_call.1} parent=5 // pred_check_branch
        %2592 = sbr.rel (%p2590) target = $region96
      $region95: #{tpu_custom_call.1} parent=5 // pred_region
        %s2593 = ssub.s32 %s26, 2
        // Predicated region
        $region97: #{tpu_custom_call.1} parent=95 // pred_check
          %p2594 = pneg %p417
        $region98: #{tpu_custom_call.1} parent=95 // pred_check_branch
          %2596 = sbr.rel (%p2594) target = $region100
        $region99: #{tpu_custom_call.1} parent=95 // pred_region
          %s2597 = sand.u32 %s402, 1
          %s2598 = scalar_lea.sflag [#allocation3], %s2597
          %s2599 = sand.u32 %s402, 1
          %s2600 = smul.addr %s2599, 8
          %s2601 = scalar_lea.vmem [#allocation2], %s2600
          %2603 = dma.done %s2598, 128
        $region100: #{tpu_custom_call.1} parent=95 // pred_fallthru
          _
      $region96: #{tpu_custom_call.1} parent=5 // pred_fallthru
        _
    $region6: #{tpu_custom_call.1} parent=1 // loop_footer
      %s30 = sadd.s32 1, %s26
    $region7: #{tpu_custom_call.1} parent=1 // loop_footer_branch
      %25 = sbr.rel target = $region3
    $region8: #{tpu_custom_call.1} parent=1 // loop_exit
      _
    %2604 = vsyncpa [#allocation3], 1
    %s2605 = scalar_lea.sflag [#allocation3], 1
    %2606 = vsyncpa %s2605, 1

</llo_original>
